<compile_context>
chip_gen: v7x
topology: tpu7x:2x2x1
jax: 0.10.0
libtpu: 0.0.40
codegen_flags: <defaults>
</compile_context>

<pallas_src>
import functools
import math

import jax
import jax.numpy as jnp
from jax.experimental import pallas as pl
from jax.experimental.pallas import tpu as pltpu


def _mhsa_kernel(num_heads, compute_dtype,
                 x_ref, wqkv_ref, bqkv_ref, wout_ref, bout_ref,
                 y_ref, attn_ref, ctx_ref):
    """One grid step = one batch element.

    x_ref:    (1, T, D)   compute_dtype      wqkv_ref: (D, 3D) compute_dtype
    bqkv_ref: (1, 3D) f32 (Q slice pre-scaled by 1/sqrt(hd))
    wout_ref: (D, D) compute_dtype           bout_ref: (1, D) f32
    y_ref:    (1, T, D) f32                  attn_ref: (1, H, T, T)
    ctx_ref:  VMEM (T, D) compute_dtype scratch (per-head contexts assembled
              here so the output projection is a single full-width matmul).
    """
    f32 = jnp.float32
    _, T, D = x_ref.shape
    hd = D // num_heads

    x = x_ref[0]                                                    # (T, D)

    # Fused QKV projection: single full-width MXU matmul, f32 accumulation.
    # The 1/sqrt(hd) scale is already folded into the Q columns of wqkv/bqkv.
    qkv = jnp.dot(x, wqkv_ref[...], preferred_element_type=f32) + bqkv_ref[...]

    # Static (unrolled) loop over heads: all slice offsets are compile-time
    # constants.  H is small, so unrolling is cheap and keeps layouts static.
    for h in range(num_heads):
        q = qkv[:, h * hd:(h + 1) * hd]                             # (T, hd)
        k = qkv[:, D + h * hd:D + (h + 1) * hd]                     # (T, hd)
        v = qkv[:, 2 * D + h * hd:2 * D + (h + 1) * hd]             # (T, hd)

        # Scores + numerically stable softmax in f32.
        s = jnp.dot(q.astype(compute_dtype), k.astype(compute_dtype).T,
                    preferred_element_type=f32)                     # (T, T)
        s = s - jnp.max(s, axis=-1, keepdims=True)
        p = jnp.exp(s)
        denom = jnp.sum(p, axis=-1, keepdims=True)
        # EUP approximate reciprocal + one Newton step -> near-exact, off VALU.
        r = pl.reciprocal(denom, approx=True)
        r = r * (2.0 - denom * r)
        p = p * r
        attn_ref[0, h] = p.astype(attn_ref.dtype)

        # This head's context, written into its lane slice of the (T, D) scratch.
        ctx_h = jnp.dot(p.astype(compute_dtype), v.astype(compute_dtype),
                        preferred_element_type=f32)                 # (T, hd)
        ctx_ref[:, h * hd:(h + 1) * hd] = ctx_h.astype(ctx_ref.dtype)

    # Output projection: one full-width (T, D) @ (D, D) matmul + bias.
    y = jnp.dot(ctx_ref[...], wout_ref[...],
                preferred_element_type=f32) + bout_ref[...]         # (T, D)
    y_ref[0] = y.astype(y_ref.dtype)


def multi_head_self_attention(x, wqkv, bqkv, wout, bout, num_heads, *,
                              compute_dtype=jnp.bfloat16,
                              attn_weights_dtype=jnp.float32,
                              vmem_limit_bytes=None):
    """Forward pass of MultiHeadSelfAttention (eval mode, mask=None).

    x:    (B, T, D) f32
    wqkv: (D, 3D)  bqkv: (3D,)   (nn.Linear weights stored as (in, out))
    wout: (D, D)   bout: (D,)
    Returns (y (B, T, D) f32, attn_weights (B, H, T, T) attn_weights_dtype).
    """
    B, T, D = x.shape
    H = num_heads
    assert D % H == 0, "embed_dim must be divisible by num_heads"
    hd = D // H
    scale = 1.0 / math.sqrt(hd)

    # Fold the query scale into the Q slice of the fused QKV weight/bias
    # (compile-time weight transform, not a runtime op).
    wqkv_s = wqkv.at[:, :D].multiply(scale)
    bqkv_s = bqkv.at[:D].multiply(scale)

    # Pre-cast matmul operands so HBM->VMEM DMAs move compute_dtype bytes and
    # the kernel never re-casts resident blocks.  Biases stay f32 (tiny).
    x_c = x.astype(compute_dtype)
    wqkv_c = wqkv_s.astype(compute_dtype)
    wout_c = wout.astype(compute_dtype)
    bqkv_c = bqkv_s.astype(jnp.float32).reshape(1, 3 * D)
    bout_c = bout.astype(jnp.float32).reshape(1, D)

    kernel = functools.partial(_mhsa_kernel, H, compute_dtype)

    y, attn = pl.pallas_call(
        kernel,
        out_shape=(
            jax.ShapeDtypeStruct((B, T, D), jnp.float32),
            jax.ShapeDtypeStruct((B, H, T, T), attn_weights_dtype),
        ),
        grid_spec=pltpu.PrefetchScalarGridSpec(
            num_scalar_prefetch=0,
            grid=(B,),
            in_specs=[
                pl.BlockSpec((1, T, D), lambda b: (b, 0, 0)),       # x
                pl.BlockSpec((D, 3 * D), lambda b: (0, 0)),         # wqkv (resident)
                pl.BlockSpec((1, 3 * D), lambda b: (0, 0)),         # bqkv
                pl.BlockSpec((D, D), lambda b: (0, 0)),             # wout (resident)
                pl.BlockSpec((1, D), lambda b: (0, 0)),             # bout
            ],
            out_specs=[
                pl.BlockSpec((1, T, D), lambda b: (b, 0, 0)),           # y
                pl.BlockSpec((1, H, T, T), lambda b: (b, 0, 0, 0)),     # attn weights
            ],
            scratch_shapes=[pltpu.VMEM((T, D), compute_dtype)],
        ),
        compiler_params=pltpu.CompilerParams(
            dimension_semantics=("parallel",),
            vmem_limit_bytes=vmem_limit_bytes),
    )(x_c, wqkv_c, bqkv_c, wout_c, bout_c)
    return y, attn


def _reference(x, wqkv, bqkv, wout, bout, num_heads):
    B, T, D = x.shape
    hd = D // num_heads
    qkv = x @ wqkv + bqkv
    q, k, v = jnp.split(qkv, 3, axis=-1)

    def heads(t):
        return jnp.transpose(t.reshape(B, T, num_heads, hd), (0, 2, 1, 3))

    q, k, v = heads(q), heads(k), heads(v)
    scores = jnp.einsum("bhtd,bhsd->bhts", q, k) / math.sqrt(hd)
    attn = jax.nn.softmax(scores, axis=-1)
    out = jnp.einsum("bhts,bhsd->bhtd", attn, v)
    out = jnp.transpose(out, (0, 2, 1, 3)).reshape(B, T, D)
    return out @ wout + bout, attn


if __name__ == "__main__":
    B, T, D, H = 2, 8, 32, 4

    key = jax.random.PRNGKey(0)
    kx, k1, k2, k3, k4 = jax.random.split(key, 5)

    x = jax.random.normal(kx, (B, T, D), dtype=jnp.float32)
    # Shapes match nn.Linear(D, 3D) / nn.Linear(D, D), stored as (in, out).
    wqkv = jax.random.normal(k1, (D, 3 * D), dtype=jnp.float32) * 0.02
    bqkv = jax.random.normal(k2, (3 * D,), dtype=jnp.float32) * 0.02
    wout = jax.random.normal(k3, (D, D), dtype=jnp.float32) * 0.02
    bout = jax.random.normal(k4, (D,), dtype=jnp.float32) * 0.02

    y_exp, attn_exp = _reference(x, wqkv, bqkv, wout, bout, H)

    # 1) f32 operand path: tight check against the reference.
    y32, a32 = multi_head_self_attention(x, wqkv, bqkv, wout, bout, H,
                                         compute_dtype=jnp.float32)
    jax.block_until_ready((y32, a32))
    assert jnp.allclose(y32, y_exp, atol=1e-4, rtol=1e-4), "f32 output mismatch"
    assert jnp.allclose(a32, attn_exp, atol=1e-4, rtol=1e-4), "f32 attn mismatch"

    # 2) Default bf16 MXU-operand path (recommended on v5e/v6e/v7x), f32 accumulation.
    ybf, abf = multi_head_self_attention(x, wqkv, bqkv, wout, bout, H)
    jax.block_until_ready((ybf, abf))
    assert jnp.allclose(ybf, y_exp, atol=1e-2, rtol=1e-2), "bf16 output mismatch"
    assert jnp.allclose(abf, attn_exp, atol=1e-2, rtol=1e-2), "bf16 attn mismatch"

    print("KERNEL_OK")
</pallas_src>

<mosaic_0001>
module attributes {stable_mosaic.version = 11 : i64} {
  func.func @_mhsa_kernel(%arg0: i32, %arg1: memref<1x8x32xf32, #tpu.memory_space<vmem>>, %arg2: memref<32x96xf32, #tpu.memory_space<vmem>>, %arg3: memref<1x96xf32, #tpu.memory_space<vmem>>, %arg4: memref<32x32xf32, #tpu.memory_space<vmem>>, %arg5: memref<1x32xf32, #tpu.memory_space<vmem>>, %arg6: memref<1x8x32xf32, #tpu.memory_space<vmem>>, %arg7: memref<1x4x8x8xf32, #tpu.memory_space<vmem>>, %arg8: memref<8x32xf32, #tpu.memory_space<vmem>>) attributes {dimension_semantics = [#tpu.dimension_semantics<parallel>], iteration_bounds = array<i64: 2>, scalar_prefetch = 0 : i64, scratch_operands = 1 : i64, tpu.core_type = #tpu.core_type<tc>, window_params = [{transform_indices = @transform_0, window_bounds = array<i64: 1, 8, 32>}, {pipeline_mode = #tpu.pipeline_mode<synchronous>, transform_indices = @transform_1, window_bounds = array<i64: 32, 96>}, {pipeline_mode = #tpu.pipeline_mode<synchronous>, transform_indices = @transform_2, window_bounds = array<i64: 1, 96>}, {pipeline_mode = #tpu.pipeline_mode<synchronous>, transform_indices = @transform_3, window_bounds = array<i64: 32, 32>}, {pipeline_mode = #tpu.pipeline_mode<synchronous>, transform_indices = @transform_4, window_bounds = array<i64: 1, 32>}, {transform_indices = @transform_5, window_bounds = array<i64: 1, 8, 32>}, {transform_indices = @transform_6, window_bounds = array<i64: 1, 4, 8, 8>}]} {
    %c0 = arith.constant 0 : index
    %c0_0 = arith.constant 0 : index
    %c0_1 = arith.constant 0 : index
    %0 = vector.load %arg1[%c0, %c0_0, %c0_1] : memref<1x8x32xf32, #tpu.memory_space<vmem>>, vector<1x8x32xf32>
    %1 = vector.shape_cast %0 : vector<1x8x32xf32> to vector<8x32xf32>
    %c0_2 = arith.constant 0 : index
    %c0_3 = arith.constant 0 : index
    %2 = vector.load %arg2[%c0_2, %c0_3] : memref<32x96xf32, #tpu.memory_space<vmem>>, vector<32x96xf32>
    %cst = arith.constant dense<0.000000e+00> : vector<8x96xf32>
    %3 = tpu.matmul %1, %2, %cst {dimension_numbers = #tpu.dot_dimension_numbers<[1], [0], [0], [1], [0, 0, 1, 1], [], []>} : vector<8x32xf32>, vector<32x96xf32>, vector<8x96xf32> -> vector<8x96xf32>
    %c0_4 = arith.constant 0 : index
    %c0_5 = arith.constant 0 : index
    %4 = vector.load %arg3[%c0_4, %c0_5] : memref<1x96xf32, #tpu.memory_space<vmem>>, vector<1x96xf32>
    %5 = vector.broadcast %4 : vector<1x96xf32> to vector<8x96xf32>
    %6 = arith.addf %3, %5 : vector<8x96xf32>
    %7 = vector.extract_strided_slice %6 {offsets = [0, 0], sizes = [8, 8], strides = [1, 1]} : vector<8x96xf32> to vector<8x8xf32>
    %8 = vector.extract_strided_slice %6 {offsets = [0, 32], sizes = [8, 8], strides = [1, 1]} : vector<8x96xf32> to vector<8x8xf32>
    %9 = vector.extract_strided_slice %6 {offsets = [0, 64], sizes = [8, 8], strides = [1, 1]} : vector<8x96xf32> to vector<8x8xf32>
    %10 = tpu.transpose %8, [1, 0] : vector<8x8xf32> -> vector<8x8xf32>
    %cst_6 = arith.constant dense<0.000000e+00> : vector<8x8xf32>
    %11 = tpu.matmul %7, %10, %cst_6 {dimension_numbers = #tpu.dot_dimension_numbers<[1], [0], [0], [1], [0, 0, 1, 1], [], []>} : vector<8x8xf32>, vector<8x8xf32>, vector<8x8xf32> -> vector<8x8xf32>
    %cst_7 = arith.constant dense<0xFF800000> : vector<8xf32>
    %12 = vector.multi_reduction <maximumf>, %11, %cst_7 [1] : vector<8x8xf32> to vector<8xf32>
    %13 = vector.shape_cast %12 : vector<8xf32> to vector<8x1xf32>
    %14 = vector.broadcast %13 : vector<8x1xf32> to vector<8x8xf32>
    %15 = arith.subf %11, %14 : vector<8x8xf32>
    %16 = math.exp %15 : vector<8x8xf32>
    %cst_8 = arith.constant dense<0.000000e+00> : vector<8xf32>
    %17 = vector.multi_reduction <add>, %16, %cst_8 [1] : vector<8x8xf32> to vector<8xf32>
    %18 = vector.shape_cast %17 : vector<8xf32> to vector<8x1xf32>
    %19 = tpu.reciprocal %18 {approx = true} : vector<8x1xf32> -> vector<8x1xf32>
    %20 = arith.mulf %18, %19 : vector<8x1xf32>
    %cst_9 = arith.constant 2.000000e+00 : f32
    %21 = vector.broadcast %cst_9 : f32 to vector<8x1xf32>
    %22 = arith.subf %21, %20 : vector<8x1xf32>
    %23 = arith.mulf %19, %22 : vector<8x1xf32>
    %24 = vector.broadcast %23 : vector<8x1xf32> to vector<8x8xf32>
    %25 = arith.mulf %16, %24 : vector<8x8xf32>
    %c0_10 = arith.constant 0 : index
    %c0_11 = arith.constant 0 : index
    %c0_12 = arith.constant 0 : index
    %c0_13 = arith.constant 0 : index
    %26 = vector.load %arg7[%c0_10, %c0_11, %c0_12, %c0_13] : memref<1x4x8x8xf32, #tpu.memory_space<vmem>>, vector<1x1x8x8xf32>
    %27 = vector.shape_cast %26 : vector<1x1x8x8xf32> to vector<8x8xf32>
    %28 = vector.shape_cast %25 : vector<8x8xf32> to vector<1x1x8x8xf32>
    tpu.vector_store %arg7[%c0_10, %c0_11, %c0_12, %c0_13], %28 {strides = array<i32>} : memref<1x4x8x8xf32, #tpu.memory_space<vmem>>, vector<1x1x8x8xf32>,
    %cst_14 = arith.constant dense<0.000000e+00> : vector<8x8xf32>
    %29 = tpu.matmul %25, %9, %cst_14 {dimension_numbers = #tpu.dot_dimension_numbers<[1], [0], [0], [1], [0, 0, 1, 1], [], []>} : vector<8x8xf32>, vector<8x8xf32>, vector<8x8xf32> -> vector<8x8xf32>
    %c0_15 = arith.constant 0 : index
    %c0_16 = arith.constant 0 : index
    %30 = vector.load %arg8[%c0_15, %c0_16] : memref<8x32xf32, #tpu.memory_space<vmem>>, vector<8x8xf32>
    tpu.vector_store %arg8[%c0_15, %c0_16], %29 {strides = array<i32>} : memref<8x32xf32, #tpu.memory_space<vmem>>, vector<8x8xf32>,
    %31 = vector.extract_strided_slice %6 {offsets = [0, 8], sizes = [8, 8], strides = [1, 1]} : vector<8x96xf32> to vector<8x8xf32>
    %32 = vector.extract_strided_slice %6 {offsets = [0, 40], sizes = [8, 8], strides = [1, 1]} : vector<8x96xf32> to vector<8x8xf32>
    %33 = vector.extract_strided_slice %6 {offsets = [0, 72], sizes = [8, 8], strides = [1, 1]} : vector<8x96xf32> to vector<8x8xf32>
    %34 = tpu.transpose %32, [1, 0] : vector<8x8xf32> -> vector<8x8xf32>
    %cst_17 = arith.constant dense<0.000000e+00> : vector<8x8xf32>
    %35 = tpu.matmul %31, %34, %cst_17 {dimension_numbers = #tpu.dot_dimension_numbers<[1], [0], [0], [1], [0, 0, 1, 1], [], []>} : vector<8x8xf32>, vector<8x8xf32>, vector<8x8xf32> -> vector<8x8xf32>
    %cst_18 = arith.constant dense<0xFF800000> : vector<8xf32>
    %36 = vector.multi_reduction <maximumf>, %35, %cst_18 [1] : vector<8x8xf32> to vector<8xf32>
    %37 = vector.shape_cast %36 : vector<8xf32> to vector<8x1xf32>
    %38 = vector.broadcast %37 : vector<8x1xf32> to vector<8x8xf32>
    %39 = arith.subf %35, %38 : vector<8x8xf32>
    %40 = math.exp %39 : vector<8x8xf32>
    %cst_19 = arith.constant dense<0.000000e+00> : vector<8xf32>
    %41 = vector.multi_reduction <add>, %40, %cst_19 [1] : vector<8x8xf32> to vector<8xf32>
    %42 = vector.shape_cast %41 : vector<8xf32> to vector<8x1xf32>
    %43 = tpu.reciprocal %42 {approx = true} : vector<8x1xf32> -> vector<8x1xf32>
    %44 = arith.mulf %42, %43 : vector<8x1xf32>
    %cst_20 = arith.constant 2.000000e+00 : f32
    %45 = vector.broadcast %cst_20 : f32 to vector<8x1xf32>
    %46 = arith.subf %45, %44 : vector<8x1xf32>
    %47 = arith.mulf %43, %46 : vector<8x1xf32>
    %48 = vector.broadcast %47 : vector<8x1xf32> to vector<8x8xf32>
    %49 = arith.mulf %40, %48 : vector<8x8xf32>
    %c0_21 = arith.constant 0 : index
    %c1 = arith.constant 1 : index
    %c0_22 = arith.constant 0 : index
    %c0_23 = arith.constant 0 : index
    %50 = vector.load %arg7[%c0_21, %c1, %c0_22, %c0_23] : memref<1x4x8x8xf32, #tpu.memory_space<vmem>>, vector<1x1x8x8xf32>
    %51 = vector.shape_cast %50 : vector<1x1x8x8xf32> to vector<8x8xf32>
    %52 = vector.shape_cast %49 : vector<8x8xf32> to vector<1x1x8x8xf32>
    tpu.vector_store %arg7[%c0_21, %c1, %c0_22, %c0_23], %52 {strides = array<i32>} : memref<1x4x8x8xf32, #tpu.memory_space<vmem>>, vector<1x1x8x8xf32>,
    %cst_24 = arith.constant dense<0.000000e+00> : vector<8x8xf32>
    %53 = tpu.matmul %49, %33, %cst_24 {dimension_numbers = #tpu.dot_dimension_numbers<[1], [0], [0], [1], [0, 0, 1, 1], [], []>} : vector<8x8xf32>, vector<8x8xf32>, vector<8x8xf32> -> vector<8x8xf32>
    %c0_25 = arith.constant 0 : index
    %c8 = arith.constant 8 : index
    %54 = vector.load %arg8[%c0_25, %c8] : memref<8x32xf32, #tpu.memory_space<vmem>>, vector<8x8xf32>
    tpu.vector_store %arg8[%c0_25, %c8], %53 {strides = array<i32>} : memref<8x32xf32, #tpu.memory_space<vmem>>, vector<8x8xf32>,
    %55 = vector.extract_strided_slice %6 {offsets = [0, 16], sizes = [8, 8], strides = [1, 1]} : vector<8x96xf32> to vector<8x8xf32>
    %56 = vector.extract_strided_slice %6 {offsets = [0, 48], sizes = [8, 8], strides = [1, 1]} : vector<8x96xf32> to vector<8x8xf32>
    %57 = vector.extract_strided_slice %6 {offsets = [0, 80], sizes = [8, 8], strides = [1, 1]} : vector<8x96xf32> to vector<8x8xf32>
    %58 = tpu.transpose %56, [1, 0] : vector<8x8xf32> -> vector<8x8xf32>
    %cst_26 = arith.constant dense<0.000000e+00> : vector<8x8xf32>
    %59 = tpu.matmul %55, %58, %cst_26 {dimension_numbers = #tpu.dot_dimension_numbers<[1], [0], [0], [1], [0, 0, 1, 1], [], []>} : vector<8x8xf32>, vector<8x8xf32>, vector<8x8xf32> -> vector<8x8xf32>
    %cst_27 = arith.constant dense<0xFF800000> : vector<8xf32>
    %60 = vector.multi_reduction <maximumf>, %59, %cst_27 [1] : vector<8x8xf32> to vector<8xf32>
    %61 = vector.shape_cast %60 : vector<8xf32> to vector<8x1xf32>
    %62 = vector.broadcast %61 : vector<8x1xf32> to vector<8x8xf32>
    %63 = arith.subf %59, %62 : vector<8x8xf32>
    %64 = math.exp %63 : vector<8x8xf32>
    %cst_28 = arith.constant dense<0.000000e+00> : vector<8xf32>
    %65 = vector.multi_reduction <add>, %64, %cst_28 [1] : vector<8x8xf32> to vector<8xf32>
    %66 = vector.shape_cast %65 : vector<8xf32> to vector<8x1xf32>
    %67 = tpu.reciprocal %66 {approx = true} : vector<8x1xf32> -> vector<8x1xf32>
    %68 = arith.mulf %66, %67 : vector<8x1xf32>
    %cst_29 = arith.constant 2.000000e+00 : f32
    %69 = vector.broadcast %cst_29 : f32 to vector<8x1xf32>
    %70 = arith.subf %69, %68 : vector<8x1xf32>
    %71 = arith.mulf %67, %70 : vector<8x1xf32>
    %72 = vector.broadcast %71 : vector<8x1xf32> to vector<8x8xf32>
    %73 = arith.mulf %64, %72 : vector<8x8xf32>
    %c0_30 = arith.constant 0 : index
    %c2 = arith.constant 2 : index
    %c0_31 = arith.constant 0 : index
    %c0_32 = arith.constant 0 : index
    %74 = vector.load %arg7[%c0_30, %c2, %c0_31, %c0_32] : memref<1x4x8x8xf32, #tpu.memory_space<vmem>>, vector<1x1x8x8xf32>
    %75 = vector.shape_cast %74 : vector<1x1x8x8xf32> to vector<8x8xf32>
    %76 = vector.shape_cast %73 : vector<8x8xf32> to vector<1x1x8x8xf32>
    tpu.vector_store %arg7[%c0_30, %c2, %c0_31, %c0_32], %76 {strides = array<i32>} : memref<1x4x8x8xf32, #tpu.memory_space<vmem>>, vector<1x1x8x8xf32>,
    %cst_33 = arith.constant dense<0.000000e+00> : vector<8x8xf32>
    %77 = tpu.matmul %73, %57, %cst_33 {dimension_numbers = #tpu.dot_dimension_numbers<[1], [0], [0], [1], [0, 0, 1, 1], [], []>} : vector<8x8xf32>, vector<8x8xf32>, vector<8x8xf32> -> vector<8x8xf32>
    %c0_34 = arith.constant 0 : index
    %c16 = arith.constant 16 : index
    %78 = vector.load %arg8[%c0_34, %c16] : memref<8x32xf32, #tpu.memory_space<vmem>>, vector<8x8xf32>
    tpu.vector_store %arg8[%c0_34, %c16], %77 {strides = array<i32>} : memref<8x32xf32, #tpu.memory_space<vmem>>, vector<8x8xf32>,
    %79 = vector.extract_strided_slice %6 {offsets = [0, 24], sizes = [8, 8], strides = [1, 1]} : vector<8x96xf32> to vector<8x8xf32>
    %80 = vector.extract_strided_slice %6 {offsets = [0, 56], sizes = [8, 8], strides = [1, 1]} : vector<8x96xf32> to vector<8x8xf32>
    %81 = vector.extract_strided_slice %6 {offsets = [0, 88], sizes = [8, 8], strides = [1, 1]} : vector<8x96xf32> to vector<8x8xf32>
    %82 = tpu.transpose %80, [1, 0] : vector<8x8xf32> -> vector<8x8xf32>
    %cst_35 = arith.constant dense<0.000000e+00> : vector<8x8xf32>
    %83 = tpu.matmul %79, %82, %cst_35 {dimension_numbers = #tpu.dot_dimension_numbers<[1], [0], [0], [1], [0, 0, 1, 1], [], []>} : vector<8x8xf32>, vector<8x8xf32>, vector<8x8xf32> -> vector<8x8xf32>
    %cst_36 = arith.constant dense<0xFF800000> : vector<8xf32>
    %84 = vector.multi_reduction <maximumf>, %83, %cst_36 [1] : vector<8x8xf32> to vector<8xf32>
    %85 = vector.shape_cast %84 : vector<8xf32> to vector<8x1xf32>
    %86 = vector.broadcast %85 : vector<8x1xf32> to vector<8x8xf32>
    %87 = arith.subf %83, %86 : vector<8x8xf32>
    %88 = math.exp %87 : vector<8x8xf32>
    %cst_37 = arith.constant dense<0.000000e+00> : vector<8xf32>
    %89 = vector.multi_reduction <add>, %88, %cst_37 [1] : vector<8x8xf32> to vector<8xf32>
    %90 = vector.shape_cast %89 : vector<8xf32> to vector<8x1xf32>
    %91 = tpu.reciprocal %90 {approx = true} : vector<8x1xf32> -> vector<8x1xf32>
    %92 = arith.mulf %90, %91 : vector<8x1xf32>
    %cst_38 = arith.constant 2.000000e+00 : f32
    %93 = vector.broadcast %cst_38 : f32 to vector<8x1xf32>
    %94 = arith.subf %93, %92 : vector<8x1xf32>
    %95 = arith.mulf %91, %94 : vector<8x1xf32>
    %96 = vector.broadcast %95 : vector<8x1xf32> to vector<8x8xf32>
    %97 = arith.mulf %88, %96 : vector<8x8xf32>
    %c0_39 = arith.constant 0 : index
    %c3 = arith.constant 3 : index
    %c0_40 = arith.constant 0 : index
    %c0_41 = arith.constant 0 : index
    %98 = vector.load %arg7[%c0_39, %c3, %c0_40, %c0_41] : memref<1x4x8x8xf32, #tpu.memory_space<vmem>>, vector<1x1x8x8xf32>
    %99 = vector.shape_cast %98 : vector<1x1x8x8xf32> to vector<8x8xf32>
    %100 = vector.shape_cast %97 : vector<8x8xf32> to vector<1x1x8x8xf32>
    tpu.vector_store %arg7[%c0_39, %c3, %c0_40, %c0_41], %100 {strides = array<i32>} : memref<1x4x8x8xf32, #tpu.memory_space<vmem>>, vector<1x1x8x8xf32>,
    %cst_42 = arith.constant dense<0.000000e+00> : vector<8x8xf32>
    %101 = tpu.matmul %97, %81, %cst_42 {dimension_numbers = #tpu.dot_dimension_numbers<[1], [0], [0], [1], [0, 0, 1, 1], [], []>} : vector<8x8xf32>, vector<8x8xf32>, vector<8x8xf32> -> vector<8x8xf32>
    %c0_43 = arith.constant 0 : index
    %c24 = arith.constant 24 : index
    %102 = vector.load %arg8[%c0_43, %c24] : memref<8x32xf32, #tpu.memory_space<vmem>>, vector<8x8xf32>
    tpu.vector_store %arg8[%c0_43, %c24], %101 {strides = array<i32>} : memref<8x32xf32, #tpu.memory_space<vmem>>, vector<8x8xf32>,
    %c0_44 = arith.constant 0 : index
    %c0_45 = arith.constant 0 : index
    %103 = vector.load %arg8[%c0_44, %c0_45] : memref<8x32xf32, #tpu.memory_space<vmem>>, vector<8x32xf32>
    %c0_46 = arith.constant 0 : index
    %c0_47 = arith.constant 0 : index
    %104 = vector.load %arg4[%c0_46, %c0_47] : memref<32x32xf32, #tpu.memory_space<vmem>>, vector<32x32xf32>
    %cst_48 = arith.constant dense<0.000000e+00> : vector<8x32xf32>
    %105 = tpu.matmul %103, %104, %cst_48 {dimension_numbers = #tpu.dot_dimension_numbers<[1], [0], [0], [1], [0, 0, 1, 1], [], []>} : vector<8x32xf32>, vector<32x32xf32>, vector<8x32xf32> -> vector<8x32xf32>
    %c0_49 = arith.constant 0 : index
    %c0_50 = arith.constant 0 : index
    %106 = vector.load %arg5[%c0_49, %c0_50] : memref<1x32xf32, #tpu.memory_space<vmem>>, vector<1x32xf32>
    %107 = vector.broadcast %106 : vector<1x32xf32> to vector<8x32xf32>
    %108 = arith.addf %105, %107 : vector<8x32xf32>
    %c0_51 = arith.constant 0 : index
    %c0_52 = arith.constant 0 : index
    %c0_53 = arith.constant 0 : index
    %109 = vector.load %arg6[%c0_51, %c0_52, %c0_53] : memref<1x8x32xf32, #tpu.memory_space<vmem>>, vector<1x8x32xf32>
    %110 = vector.shape_cast %109 : vector<1x8x32xf32> to vector<8x32xf32>
    %111 = vector.shape_cast %108 : vector<8x32xf32> to vector<1x8x32xf32>
    tpu.vector_store %arg6[%c0_51, %c0_52, %c0_53], %111 {strides = array<i32>} : memref<1x8x32xf32, #tpu.memory_space<vmem>>, vector<1x8x32xf32>,
    return
  }
  func.func @transform_0(%arg0: i32) -> (i32, i32, i32) {
    %c0_i32 = arith.constant 0 : i32
    %c0_i32_0 = arith.constant 0 : i32
    %c0_i32_1 = arith.constant 0 : i32
    return %arg0, %c0_i32, %c0_i32_0 : i32, i32, i32
  }
  func.func @transform_1(%arg0: i32) -> (i32, i32) {
    %c0_i32 = arith.constant 0 : i32
    %c0_i32_0 = arith.constant 0 : i32
    %c0_i32_1 = arith.constant 0 : i32
    return %c0_i32, %c0_i32_0 : i32, i32
  }
  func.func @transform_2(%arg0: i32) -> (i32, i32) {
    %c0_i32 = arith.constant 0 : i32
    %c0_i32_0 = arith.constant 0 : i32
    %c0_i32_1 = arith.constant 0 : i32
    return %c0_i32, %c0_i32_0 : i32, i32
  }
  func.func @transform_3(%arg0: i32) -> (i32, i32) {
    %c0_i32 = arith.constant 0 : i32
    %c0_i32_0 = arith.constant 0 : i32
    %c0_i32_1 = arith.constant 0 : i32
    return %c0_i32, %c0_i32_0 : i32, i32
  }
  func.func @transform_4(%arg0: i32) -> (i32, i32) {
    %c0_i32 = arith.constant 0 : i32
    %c0_i32_0 = arith.constant 0 : i32
    %c0_i32_1 = arith.constant 0 : i32
    return %c0_i32, %c0_i32_0 : i32, i32
  }
  func.func @transform_5(%arg0: i32) -> (i32, i32, i32) {
    %c0_i32 = arith.constant 0 : i32
    %c0_i32_0 = arith.constant 0 : i32
    %c0_i32_1 = arith.constant 0 : i32
    return %arg0, %c0_i32, %c0_i32_0 : i32, i32, i32
  }
  func.func @transform_6(%arg0: i32) -> (i32, i32, i32, i32) {
    %c0_i32 = arith.constant 0 : i32
    %c0_i32_0 = arith.constant 0 : i32
    %c0_i32_1 = arith.constant 0 : i32
    %c0_i32_2 = arith.constant 0 : i32
    return %arg0, %c0_i32, %c0_i32_0, %c0_i32_1 : i32, i32, i32, i32
  }
}

</mosaic_0001>

<llo_original>
// kernel: tpu_custom_call.1
$region0: #{tpu_custom_call.1}
  #allocation0 [shape = 'u32[]', space=smem, size = 0x4, offset = 0x4, fixed_abs, tag = 'smem constant byte address 0x4 - core index']
  #allocation1 [shape = 'u32[144,128]{1,0:T(1,128)}', space=vmem, size = 0x12000, scoped, tag = 'internal scratch']
  #allocation2 [shape = 'f32[8,32]{1,0:T(8,128)}', space=vmem, size = 0x1000, scoped, tag = 'scratch operand']
  %s0 = inlined_call_operand.hbm [shape: f32[2,8,32], index: 0, kind: input, shape index: {}]
  %s1 = inlined_call_operand.hbm [shape: f32[32,96], index: 1, kind: input, shape index: {}]
  %s2 = inlined_call_operand.vmem [shape: f32[1,96], index: 2, kind: input, shape index: {}]
  %s3 = inlined_call_operand.hbm [shape: f32[32,32], index: 3, kind: input, shape index: {}]
  %s4 = inlined_call_operand.vmem [shape: f32[1,32], index: 4, kind: input, shape index: {}]
  %s5 = inlined_call_operand.hbm [shape: f32[2,8,32], index: 5, kind: output, shape index: {0}]
  %s6 = inlined_call_operand.hbm [shape: f32[2,4,8,8], index: 6, kind: output, shape index: {1}]
  %7 = xla_tuple %s5, %s6
  %s8 = sld [smem:[#allocation0]]
  $region73: #{tpu_custom_call.1} parent=0
    _
  %s10 = ssub.s32 1, %s8
  %s11 = scalar_select 0, %s10, %s8
  $region1: #{tpu_custom_call.1} parent=0
    #allocation3 [shape = 'u8[8192]{0}', space=vmem, size = 0x2000, scoped, tag = 'input window, operand 0']
    #allocation4 [shape = 's32[2]{0}', space=sflag, size = 0x8, scoped, tag = 'scoped memory for tpu_custom_call.1']
    #allocation5 [shape = 's32[2]{0}', space=sflag, size = 0x8, scoped, tag = 'scoped memory for tpu_custom_call.1']
    #allocation6 [shape = 'u8[16384]{0}', space=vmem, size = 0x4000, scoped, tag = 'input window, operand 1, single buffered']
    #allocation7 [shape = 's32[1]{0}', space=sflag, size = 0x4, scoped, tag = 'scoped memory for tpu_custom_call.1']
    #allocation8 [shape = 'u8[16384]{0}', space=vmem, size = 0x4000, scoped, tag = 'input window, operand 3, single buffered']
    #allocation9 [shape = 'u8[8192]{0}', space=vmem, size = 0x2000, scoped, tag = 'output window, operand 0']
    #allocation10 [shape = 'u8[32768]{0}', space=vmem, size = 0x8000, scoped, tag = 'output window, operand 1']
    #allocation11 [shape = 's32[2]{0}', space=sflag, size = 0x8, scoped, tag = 'scoped memory for tpu_custom_call.1']
    %12 = vsyncpa [#allocation4], 0
    %s13 = scalar_lea.sflag [#allocation4], 1
    %14 = vsyncpa %s13, 0
    %15 = vsyncpa [#allocation7], 0
    %16 = vsyncpa [#allocation5], 0
    %s17 = scalar_lea.sflag [#allocation5], 1
    %18 = vsyncpa %s17, 0
    %19 = vsyncpa [#allocation11], 0
    %s20 = scalar_lea.sflag [#allocation11], 1
    %21 = vsyncpa %s20, 0
    loop: start=0, step=1, limit=4
    $region2: #{tpu_custom_call.1} parent=1 // loop_pre_header
      _
    $region3: #{tpu_custom_call.1} parent=1 // loop_header
      %s23 = sphi 0, %s27
      %p24 = scmp.ge.s32.totalorder %s23, 4
      %s33 = sphi 0, %s35
      %s36 = sphi 0, %s33
      %s37 = sphi 0, %s36
      %s53 = sphi 0, %s37
      %s57 = sphi 0, %s57
      %s59 = sphi 0, %s57
      %s60 = sphi 0, %s59
      %s74 = sphi 0, %s60
      %s78 = sphi 0, %s78
      %s80 = sphi 0, %s78
      %s81 = sphi 0, %s80
      %s95 = sphi 0, %s81
      %s99 = sphi 0, %s99
      %s101 = sphi 0, %s99
      %s102 = sphi 0, %s101
      %s116 = sphi 0, %s102
      %s120 = sphi 0, %s120
      %s122 = sphi 0, %s120
      %s123 = sphi 0, %s122
      %s137 = sphi 0, %s123
      %s143 = sphi 0, %s145
      %s146 = sphi 0, %s143
      %s147 = sphi 0, %s146
      %s163 = sphi 0, %s147
      %s169 = sphi 0, %s171
      %s172 = sphi 0, %s169
      %s173 = sphi 0, %s172
      %s189 = sphi 0, %s173
    $region4: #{tpu_custom_call.1} parent=1 // loop_header_branch
      %26 = sbr.rel (%p24) target = $region8
    $region5: #{tpu_custom_call.1} parent=1 // loop_body
      %s28 = ssub.s32 %s23, 1
      %s29 = ssub.s32 %s23, 2
      %s30 = sadd.s32 %s23, 1
      %s31 = ssub.s32 %s23, %s30
      %p32 = scmp.eq.s32.totalorder %s31, 0
      %s34 = sadd.s32 %s33, 1
      %s35 = scalar_select %p32, %s33, %s34
      %p38 = pneg %p32
      %p39 = scmp.eq.s32.totalorder %s23, 1
      %p40 = por %p38, %p39
      %p41 = scmp.ne.s32.totalorder %s33, %s36
      %p42 = scmp.eq.s32.totalorder %s23, 0
      %p43 = por %p41, %p42
      %p44 = scmp.ne.s32.totalorder %s33, %s36
      %p45 = scmp.eq.s32.totalorder %s28, 1
      %p46 = por %p44, %p45
      %p47 = scmp.ne.s32.totalorder %s36, %s37
      %p48 = scmp.eq.s32.totalorder %s28, 0
      %p49 = por %p47, %p48
      %p50 = scmp.ne.s32.totalorder %s36, %s37
      %p51 = scmp.eq.s32.totalorder %s29, 1
      %p52 = por %p50, %p51
      %p54 = scmp.ne.s32.totalorder %s37, %s53
      %p55 = scmp.eq.s32.totalorder %s29, 0
      %p56 = por %p54, %p55
      %s58 = sadd.s32 %s57, 1
      %p61 = scmp.eq.s32.totalorder %s23, 1
      %p62 = scmp.ne.s32.totalorder %s57, %s59
      %p63 = scmp.eq.s32.totalorder %s23, 0
      %p64 = por %p62, %p63
      %p65 = scmp.ne.s32.totalorder %s57, %s59
      %p66 = scmp.eq.s32.totalorder %s28, 1
      %p67 = por %p65, %p66
      %p68 = scmp.ne.s32.totalorder %s59, %s60
      %p69 = scmp.eq.s32.totalorder %s28, 0
      %p70 = por %p68, %p69
      %p71 = scmp.ne.s32.totalorder %s59, %s60
      %p72 = scmp.eq.s32.totalorder %s29, 1
      %p73 = por %p71, %p72
      %p75 = scmp.ne.s32.totalorder %s60, %s74
      %p76 = scmp.eq.s32.totalorder %s29, 0
      %p77 = por %p75, %p76
      %s79 = sadd.s32 %s78, 1
      %p82 = scmp.eq.s32.totalorder %s23, 1
      %p83 = scmp.ne.s32.totalorder %s78, %s80
      %p84 = scmp.eq.s32.totalorder %s23, 0
      %p85 = por %p83, %p84
      %p86 = scmp.ne.s32.totalorder %s78, %s80
      %p87 = scmp.eq.s32.totalorder %s28, 1
      %p88 = por %p86, %p87
      %p89 = scmp.ne.s32.totalorder %s80, %s81
      %p90 = scmp.eq.s32.totalorder %s28, 0
      %p91 = por %p89, %p90
      %p92 = scmp.ne.s32.totalorder %s80, %s81
      %p93 = scmp.eq.s32.totalorder %s29, 1
      %p94 = por %p92, %p93
      %p96 = scmp.ne.s32.totalorder %s81, %s95
      %p97 = scmp.eq.s32.totalorder %s29, 0
      %p98 = por %p96, %p97
      %s100 = sadd.s32 %s99, 1
      %p103 = scmp.eq.s32.totalorder %s23, 1
      %p104 = scmp.ne.s32.totalorder %s99, %s101
      %p105 = scmp.eq.s32.totalorder %s23, 0
      %p106 = por %p104, %p105
      %p107 = scmp.ne.s32.totalorder %s99, %s101
      %p108 = scmp.eq.s32.totalorder %s28, 1
      %p109 = por %p107, %p108
      %p110 = scmp.ne.s32.totalorder %s101, %s102
      %p111 = scmp.eq.s32.totalorder %s28, 0
      %p112 = por %p110, %p111
      %p113 = scmp.ne.s32.totalorder %s101, %s102
      %p114 = scmp.eq.s32.totalorder %s29, 1
      %p115 = por %p113, %p114
      %p117 = scmp.ne.s32.totalorder %s102, %s116
      %p118 = scmp.eq.s32.totalorder %s29, 0
      %p119 = por %p117, %p118
      %s121 = sadd.s32 %s120, 1
      %p124 = scmp.eq.s32.totalorder %s23, 1
      %p125 = scmp.ne.s32.totalorder %s120, %s122
      %p126 = scmp.eq.s32.totalorder %s23, 0
      %p127 = por %p125, %p126
      %p128 = scmp.ne.s32.totalorder %s120, %s122
      %p129 = scmp.eq.s32.totalorder %s28, 1
      %p130 = por %p128, %p129
      %p131 = scmp.ne.s32.totalorder %s122, %s123
      %p132 = scmp.eq.s32.totalorder %s28, 0
      %p133 = por %p131, %p132
      %p134 = scmp.ne.s32.totalorder %s122, %s123
      %p135 = scmp.eq.s32.totalorder %s29, 1
      %p136 = por %p134, %p135
      %p138 = scmp.ne.s32.totalorder %s123, %s137
      %p139 = scmp.eq.s32.totalorder %s29, 0
      %p140 = por %p138, %p139
      %s141 = ssub.s32 %s23, %s30
      %p142 = scmp.eq.s32.totalorder %s141, 0
      %s144 = sadd.s32 %s143, 1
      %s145 = scalar_select %p142, %s143, %s144
      %p148 = pneg %p142
      %p149 = scmp.eq.s32.totalorder %s23, 1
      %p150 = por %p148, %p149
      %p151 = scmp.ne.s32.totalorder %s143, %s146
      %p152 = scmp.eq.s32.totalorder %s23, 0
      %p153 = por %p151, %p152
      %p154 = scmp.ne.s32.totalorder %s143, %s146
      %p155 = scmp.eq.s32.totalorder %s28, 1
      %p156 = por %p154, %p155
      %p157 = scmp.ne.s32.totalorder %s146, %s147
      %p158 = scmp.eq.s32.totalorder %s28, 0
      %p159 = por %p157, %p158
      %p160 = scmp.ne.s32.totalorder %s146, %s147
      %p161 = scmp.eq.s32.totalorder %s29, 1
      %p162 = por %p160, %p161
      %p164 = scmp.ne.s32.totalorder %s147, %s163
      %p165 = scmp.eq.s32.totalorder %s29, 0
      %p166 = por %p164, %p165
      %s167 = ssub.s32 %s23, %s30
      %p168 = scmp.eq.s32.totalorder %s167, 0
      %s170 = sadd.s32 %s169, 1
      %s171 = scalar_select %p168, %s169, %s170
      %p174 = pneg %p168
      %p175 = scmp.eq.s32.totalorder %s23, 1
      %p176 = por %p174, %p175
      %p177 = scmp.ne.s32.totalorder %s169, %s172
      %p178 = scmp.eq.s32.totalorder %s23, 0
      %p179 = por %p177, %p178
      %p180 = scmp.ne.s32.totalorder %s169, %s172
      %p181 = scmp.eq.s32.totalorder %s28, 1
      %p182 = por %p180, %p181
      %p183 = scmp.ne.s32.totalorder %s172, %s173
      %p184 = scmp.eq.s32.totalorder %s28, 0
      %p185 = por %p183, %p184
      %p186 = scmp.ne.s32.totalorder %s172, %s173
      %p187 = scmp.eq.s32.totalorder %s29, 1
      %p188 = por %p186, %p187
      %p190 = scmp.ne.s32.totalorder %s173, %s189
      %p191 = scmp.eq.s32.totalorder %s29, 0
      %p192 = por %p190, %p191
      %p193 = scmp.le.s32.totalorder 1, %s23
      %p194 = scmp.lt.s32.totalorder %s23, 3
      %p195 = pnand %p193, %p194
      %p196 = pneg %p195
      // Predicated region
      $region9: #{tpu_custom_call.1} parent=5 // pred_check
        _
      $region10: #{tpu_custom_call.1} parent=5 // pred_check_branch
        %198 = sbr.rel (%p195) target = $region12
      $region11: #{tpu_custom_call.1} parent=5 // pred_region
        %s199 = ssub.s32 %s23, 1
        // Predicated region
        $region13: #{tpu_custom_call.1} parent=11 // pred_check
          %p200 = pneg %p70
        $region14: #{tpu_custom_call.1} parent=11 // pred_check_branch
          %202 = sbr.rel (%p200) target = $region16
        $region15: #{tpu_custom_call.1} parent=11 // pred_region
          %s204 = ssub.s32 512, 512
          %205 = vsyncadd [#allocation7], %s204
          %s206 = sshll.u32 [#allocation6], 4
          %s207 = int_to_ptr.vmem [resolvable:$true] %s206
          %212 = dma.hbm_to_vmem [thread:$0]  %s1, 512, %s207, [#allocation7], 128, 128, 8
        $region16: #{tpu_custom_call.1} parent=11 // pred_fallthru
          _
        // Predicated region
        $region17: #{tpu_custom_call.1} parent=11 // pred_check
          %p213 = pneg %p91
        $region18: #{tpu_custom_call.1} parent=11 // pred_check_branch
          %215 = sbr.rel (%p213) target = $region20
        $region19: #{tpu_custom_call.1} parent=11 // pred_region
          _
        $region20: #{tpu_custom_call.1} parent=11 // pred_fallthru
          _
        // Predicated region
        $region21: #{tpu_custom_call.1} parent=11 // pred_check
          %p216 = pneg %p112
        $region22: #{tpu_custom_call.1} parent=11 // pred_check_branch
          %218 = sbr.rel (%p216) target = $region24
        $region23: #{tpu_custom_call.1} parent=11 // pred_region
          %s220 = ssub.s32 512, 512
          %221 = vsyncadd [#allocation7], %s220
          %s222 = sshll.u32 [#allocation8], 4
          %s223 = int_to_ptr.vmem [resolvable:$true] %s222
          %228 = dma.hbm_to_vmem [thread:$0]  %s3, 512, %s223, [#allocation7], 128, 128, 8
        $region24: #{tpu_custom_call.1} parent=11 // pred_fallthru
          _
        // Predicated region
        $region25: #{tpu_custom_call.1} parent=11 // pred_check
          %p229 = pneg %p133
        $region26: #{tpu_custom_call.1} parent=11 // pred_check_branch
          %231 = sbr.rel (%p229) target = $region28
        $region27: #{tpu_custom_call.1} parent=11 // pred_region
          _
        $region28: #{tpu_custom_call.1} parent=11 // pred_fallthru
          _
      $region12: #{tpu_custom_call.1} parent=5 // pred_fallthru
        _
      %p232 = scmp.lt.s32.totalorder %s23, 2
      // Predicated region
      $region29: #{tpu_custom_call.1} parent=5 // pred_check
        %p233 = pneg %p232
      $region30: #{tpu_custom_call.1} parent=5 // pred_check_branch
        %235 = sbr.rel (%p233) target = $region32
      $region31: #{tpu_custom_call.1} parent=5 // pred_region
        // Predicated region
        $region33: #{tpu_custom_call.1} parent=31 // pred_check
          %p236 = pneg %p43
        $region34: #{tpu_custom_call.1} parent=31 // pred_check_branch
          %238 = sbr.rel (%p236) target = $region36
        $region35: #{tpu_custom_call.1} parent=31 // pred_region
          %s239 = sand.u32 %s33, 1
          %s240 = scalar_lea.sflag [#allocation4], %s239
          %s241 = sand.u32 %s33, 1
          %s242 = smul.addr %s241, 8
          %s243 = scalar_lea.vmem [#allocation3], %s242
          %s245 = ssub.s32 128, 128
          %246 = vsyncadd %s240, %s245
          %s247 = smul.addr %s23, 128
          %s248 = scalar_lea.hbm %s0, %s247
          %s250 = sshll.u32 %s243, 4
          %s251 = int_to_ptr.vmem [resolvable:$true] %s250
          %253 = dma.hbm_to_vmem [thread:$0]  %s248, 128, %s251, %s240
        $region36: #{tpu_custom_call.1} parent=31 // pred_fallthru
          _
      $region32: #{tpu_custom_call.1} parent=5 // pred_fallthru
        _
      %p254 = scmp.le.s32.totalorder 1, %s23
      %p255 = scmp.lt.s32.totalorder %s23, 3
      %p256 = pnand %p254, %p255
      %p257 = pneg %p256
      // Predicated region
      $region37: #{tpu_custom_call.1} parent=5 // pred_check
        _
      $region38: #{tpu_custom_call.1} parent=5 // pred_check_branch
        %259 = sbr.rel (%p256) target = $region40
      $region39: #{tpu_custom_call.1} parent=5 // pred_region
        %s260 = ssub.s32 %s23, 1
        %s261 = sand.u32 %s36, 1
        %s262 = scalar_lea.sflag [#allocation4], %s261
        %s263 = sand.u32 %s36, 1
        %s264 = smul.addr %s263, 8
        %s265 = scalar_lea.vmem [#allocation3], %s264
        // Predicated region
        $region41: #{tpu_custom_call.1} parent=39 // pred_check
          %p266 = pneg %p49
        $region42: #{tpu_custom_call.1} parent=39 // pred_check_branch
          %268 = sbr.rel (%p266) target = $region44
        $region43: #{tpu_custom_call.1} parent=39 // pred_region
          %269 = dma.done %s262, 128
        $region44: #{tpu_custom_call.1} parent=39 // pred_fallthru
          _
        // Predicated region
        $region45: #{tpu_custom_call.1} parent=39 // pred_check
          %p270 = pneg %p70
        $region46: #{tpu_custom_call.1} parent=39 // pred_check_branch
          %272 = sbr.rel (%p270) target = $region48
        $region47: #{tpu_custom_call.1} parent=39 // pred_region
          %273 = dma.done [#allocation7], 512
        $region48: #{tpu_custom_call.1} parent=39 // pred_fallthru
          _
        // Predicated region
        $region49: #{tpu_custom_call.1} parent=39 // pred_check
          %p274 = pneg %p112
        $region50: #{tpu_custom_call.1} parent=39 // pred_check_branch
          %276 = sbr.rel (%p274) target = $region52
        $region51: #{tpu_custom_call.1} parent=39 // pred_region
          %277 = dma.done [#allocation7], 512
        $region52: #{tpu_custom_call.1} parent=39 // pred_fallthru
          _
        %s278 = sand.u32 %s36, 1
        %s279 = scalar_lea.sflag [#allocation4], %s278
        %s280 = sand.u32 %s36, 1
        %s281 = smul.addr %s280, 8
        %s282 = scalar_lea.vmem [#allocation3], %s281
        %p283 = pneg %p49
        %p284 = pneg %p46
        %p285 = pneg %p70
        %p286 = pneg %p67
        %p287 = pneg %p91
        %p288 = pneg %p88
        %p289 = pneg %p112
        %p290 = pneg %p109
        %p291 = pneg %p133
        %p292 = pneg %p130
        %p293 = pneg %p159
        %p294 = pneg %p156
        %s295 = sand.u32 %s146, 1
        %s296 = scalar_lea.sflag [#allocation5], %s295
        %s297 = sand.u32 %s146, 1
        %s298 = smul.addr %s297, 8
        %s299 = scalar_lea.vmem [#allocation9], %s298
        %p300 = pneg %p185
        %p301 = pneg %p182
        %s302 = sand.u32 %s172, 1
        %s303 = scalar_lea.sflag [#allocation11], %s302
        %s304 = sand.u32 %s172, 1
        %s305 = smul.addr %s304, 32
        %s306 = scalar_lea.vmem [#allocation10], %s305
        %v307 = vld [vmem:[%s265] sm:$0xff]
        %v308 = vld [vmem:[#allocation6] sm:$0xff]
        %v309 = vld [vmem:[#allocation6 + $0x8] sm:$0xff]
        %v310 = vld [vmem:[#allocation6 + $0x10] sm:$0xff]
        %v311 = vld [vmem:[#allocation6 + $0x18] sm:$0xff]
        %v312 = vld [vmem:[%s2] sm:$0x1]
        %v314 = vlaneseq
        %v315 = vshrl.u32 %v314, 7
        %v316 = vsub.s32 0, %v315
        %v317 = vrot.slane %v312, %v316
        %vm319 = vcmask 261120
        %v321 = vsel %vm319, %v307, 0
        %323 = vmatprep.subr.mxu0 0.0
        %324 = vmatpush1.msra.mxu0 %v308
        %325 = vmatprep.subr.mxu0 0.0
        %326 = vmatpush1.msra.mxu0 %v309
        %327 = vmatprep.subr.mxu0 0.0
        %328 = vmatpush1.msra.mxu0 %v310
        %329 = vmatprep.subr.mxu0 0.0
        %330 = vmatpush1.msra.mxu0 %v311
        %331 = vmatprep.subr.mxu0 0.0
        %332 = vmatpush1.msra.mxu0 0.0
        %333 = vmatprep.subr.mxu0 0.0
        %334 = vmatpush1.msra.mxu0 0.0
        %335 = vmatprep.subr.mxu0 0.0
        %336 = vmatpush1.msra.mxu0 0.0
        %337 = vmatprep.subr.mxu0 0.0
        %338 = vmatpush1.msra.mxu0 0.0
        %339 = vmatprep.subr.mxu0 0.0
        %340 = vmatpush1.msra.mxu0 0.0
        %341 = vmatprep.subr.mxu0 0.0
        %342 = vmatpush1.msra.mxu0 0.0
        %343 = vmatprep.subr.mxu0 0.0
        %344 = vmatpush1.msra.mxu0 0.0
        %345 = vmatprep.subr.mxu0 0.0
        %346 = vmatpush1.msra.mxu0 0.0
        %347 = vmatprep.subr.mxu0 0.0
        %348 = vmatpush1.msra.mxu0 0.0
        %349 = vmatprep.subr.mxu0 0.0
        %350 = vmatpush1.msra.mxu0 0.0
        %351 = vmatprep.subr.mxu0 0.0
        %352 = vmatpush1.msra.mxu0 0.0
        %353 = vmatprep.subr.mxu0 0.0
        %354 = vmatpush1.msra.mxu0 0.0
        %355 = vmatprep.subr.mxu0 0.0
        %356 = vmatpush1.msra.mxu0 0.0
        %357 = vmatprep.subr.mxu0 0.0
        %358 = vmatpush1.msra.mxu0 0.0
        %359 = vmatprep.subr.mxu0 0.0
        %360 = vmatpush1.msra.mxu0 0.0
        %361 = vmatprep.subr.mxu0 0.0
        %362 = vmatpush1.msra.mxu0 0.0
        %363 = vmatprep.subr.mxu0 0.0
        %364 = vmatpush1.msra.mxu0 0.0
        %365 = vmatprep.subr.mxu0 0.0
        %366 = vmatpush1.msra.mxu0 0.0
        %367 = vmatprep.subr.mxu0 0.0
        %368 = vmatpush1.msra.mxu0 0.0
        %369 = vmatprep.subr.mxu0 0.0
        %370 = vmatpush1.msra.mxu0 0.0
        %371 = vmatprep.subr.mxu0 0.0
        %372 = vmatpush1.msra.mxu0 0.0
        %373 = vmatprep.subr.mxu0 0.0
        %374 = vmatpush1.msra.mxu0 0.0
        %375 = vmatprep.subr.mxu0 0.0
        %376 = vmatpush1.msra.mxu0 0.0
        %377 = vmatprep.subr.mxu0 0.0
        %378 = vmatpush1.msra.mxu0 0.0
        %379 = vmatprep.subr.mxu0 0.0
        %380 = vmatpush1.msra.mxu0 0.0
        %381 = vmatprep.subr.mxu0 0.0
        %382 = vmatpush1.msra.mxu0 0.0
        %383 = vmatprep.subr.mxu0 0.0
        %384 = vmatpush1.msra.mxu0 0.0
        %385 = vmatprep.subr.mxu0 0.0
        %386 = vmatpush1.msra.mxu0 0.0
        %387 = vmatprep.mubr.f32.mxu0 0.0
        %388 = vmatmul.mubr.f32.gmra.mrb[0].mxu0 %v321
        %v389 = vpop.f32.mrb[0].mxu0
        %v390 = vadd.f32 %v317, %v389
        %v391 = vpop.f32.mrb[0].mxu0
        %392 = vdwg.mxu0
        %394 = vrot.lane.b32.xlu0 %v390, 96
        %v395 = vpop.permute.xlu0 %394
        %vm396 = vcmask 64512
        %v397 = vsel %vm396, %v390, 0
        %v399 = vsel %vm396, %v395, 0
        %401 = vmatprep.subr.mxu0 0.0
        %402 = vmatpush1.xpose.msra.mxu0 %v399
        %403 = vmatprep.subr.mxu0 0.0
        %404 = vmatpush1.xpose.msra.mxu0 0.0
        %405 = vmatprep.subr.mxu0 0.0
        %406 = vmatpush1.xpose.msra.mxu0 0.0
        %407 = vmatprep.subr.mxu0 0.0
        %408 = vmatpush1.xpose.msra.mxu0 0.0
        %409 = vmatprep.subr.mxu0 0.0
        %410 = vmatpush1.xpose.msra.mxu0 0.0
        %411 = vmatprep.subr.mxu0 0.0
        %412 = vmatpush1.xpose.msra.mxu0 0.0
        %413 = vmatprep.subr.mxu0 0.0
        %414 = vmatpush1.xpose.msra.mxu0 0.0
        %415 = vmatprep.subr.mxu0 0.0
        %416 = vmatpush1.xpose.msra.mxu0 0.0
        %417 = vmatprep.subr.mxu0 0.0
        %418 = vmatpush1.xpose.msra.mxu0 0.0
        %419 = vmatprep.subr.mxu0 0.0
        %420 = vmatpush1.xpose.msra.mxu0 0.0
        %421 = vmatprep.subr.mxu0 0.0
        %422 = vmatpush1.xpose.msra.mxu0 0.0
        %423 = vmatprep.subr.mxu0 0.0
        %424 = vmatpush1.xpose.msra.mxu0 0.0
        %425 = vmatprep.subr.mxu0 0.0
        %426 = vmatpush1.xpose.msra.mxu0 0.0
        %427 = vmatprep.subr.mxu0 0.0
        %428 = vmatpush1.xpose.msra.mxu0 0.0
        %429 = vmatprep.subr.mxu0 0.0
        %430 = vmatpush1.xpose.msra.mxu0 0.0
        %431 = vmatprep.subr.mxu0 0.0
        %432 = vmatpush1.xpose.msra.mxu0 0.0
        %433 = vmatprep.subr.mxu0 0.0
        %434 = vmatpush1.xpose.msra.mxu0 0.0
        %435 = vmatprep.subr.mxu0 0.0
        %436 = vmatpush1.xpose.msra.mxu0 0.0
        %437 = vmatprep.subr.mxu0 0.0
        %438 = vmatpush1.xpose.msra.mxu0 0.0
        %439 = vmatprep.subr.mxu0 0.0
        %440 = vmatpush1.xpose.msra.mxu0 0.0
        %441 = vmatprep.subr.mxu0 0.0
        %442 = vmatpush1.xpose.msra.mxu0 0.0
        %443 = vmatprep.subr.mxu0 0.0
        %444 = vmatpush1.xpose.msra.mxu0 0.0
        %445 = vmatprep.subr.mxu0 0.0
        %446 = vmatpush1.xpose.msra.mxu0 0.0
        %447 = vmatprep.subr.mxu0 0.0
        %448 = vmatpush1.xpose.msra.mxu0 0.0
        %449 = vmatprep.subr.mxu0 0.0
        %450 = vmatpush1.xpose.msra.mxu0 0.0
        %451 = vmatprep.subr.mxu0 0.0
        %452 = vmatpush1.xpose.msra.mxu0 0.0
        %453 = vmatprep.subr.mxu0 0.0
        %454 = vmatpush1.xpose.msra.mxu0 0.0
        %455 = vmatprep.subr.mxu0 0.0
        %456 = vmatpush1.xpose.msra.mxu0 0.0
        %457 = vmatprep.subr.mxu0 0.0
        %458 = vmatpush1.xpose.msra.mxu0 0.0
        %459 = vmatprep.subr.mxu0 0.0
        %460 = vmatpush1.xpose.msra.mxu0 0.0
        %461 = vmatprep.subr.mxu0 0.0
        %462 = vmatpush1.xpose.msra.mxu0 0.0
        %463 = vmatprep.subr.mxu0 0.0
        %464 = vmatpush1.xpose.msra.mxu0 0.0
        %465 = vmatprep.mubr.f32.mxu0 0.0
        %466 = vmatmul.mubr.f32.gmra.mrb[0].mxu0 %v397
        %v467 = vpop.f32.mrb[0].mxu0
        %v468 = vadd.f32 0.0, %v467
        %v469 = vpop.f32.mrb[0].mxu0
        %470 = vdwg.mxu0
        %v471 = vsel %vm396, %v468, -inf
        %472 = vmax.xlane.f32.xlu0 %v471
        %v473 = vpop.xlane.xlu0 %472
        %v474 = vsub.f32 %v468, %v473
        %v475 = vmul.f32 %v474, 1.442695
        %v476 = vpow.pop %v475
        %v477 = vsel %vm396, %v476, 0.0
        %478 = vadd.xlane.f32.xlu0 %v477
        %v479 = vpop.xlane.xlu0 %478
        %v480 = vrcp.pop %v479
        %v481 = vmul.f32 %v479, %v480
        %v482 = vsub.f32 2.0, %v481
        %v483 = vmul.f32 %v480, %v482
        %v484 = vmul.f32 %v476, %v483
        %485 = vst.msk [vmem:[%s306] sm:$0xff] %vm396, %v484
        %486 = vrot.lane.b32.xlu0 %v390, 64
        %v487 = vpop.permute.xlu0 %486
        %v490 = vsel %vm396, %v484, 0
        %492 = vmatprep.subr.mxu0 0.0
        %493 = vmatpush1.msra.mxu0 %v487
        %494 = vmatprep.subr.mxu0 0.0
        %495 = vmatpush1.msra.mxu0 0.0
        %496 = vmatprep.subr.mxu0 0.0
        %497 = vmatpush1.msra.mxu0 0.0
        %498 = vmatprep.subr.mxu0 0.0
        %499 = vmatpush1.msra.mxu0 0.0
        %500 = vmatprep.subr.mxu0 0.0
        %501 = vmatpush1.msra.mxu0 0.0
        %502 = vmatprep.subr.mxu0 0.0
        %503 = vmatpush1.msra.mxu0 0.0
        %504 = vmatprep.subr.mxu0 0.0
        %505 = vmatpush1.msra.mxu0 0.0
        %506 = vmatprep.subr.mxu0 0.0
        %507 = vmatpush1.msra.mxu0 0.0
        %508 = vmatprep.subr.mxu0 0.0
        %509 = vmatpush1.msra.mxu0 0.0
        %510 = vmatprep.subr.mxu0 0.0
        %511 = vmatpush1.msra.mxu0 0.0
        %512 = vmatprep.subr.mxu0 0.0
        %513 = vmatpush1.msra.mxu0 0.0
        %514 = vmatprep.subr.mxu0 0.0
        %515 = vmatpush1.msra.mxu0 0.0
        %516 = vmatprep.subr.mxu0 0.0
        %517 = vmatpush1.msra.mxu0 0.0
        %518 = vmatprep.subr.mxu0 0.0
        %519 = vmatpush1.msra.mxu0 0.0
        %520 = vmatprep.subr.mxu0 0.0
        %521 = vmatpush1.msra.mxu0 0.0
        %522 = vmatprep.subr.mxu0 0.0
        %523 = vmatpush1.msra.mxu0 0.0
        %524 = vmatprep.subr.mxu0 0.0
        %525 = vmatpush1.msra.mxu0 0.0
        %526 = vmatprep.subr.mxu0 0.0
        %527 = vmatpush1.msra.mxu0 0.0
        %528 = vmatprep.subr.mxu0 0.0
        %529 = vmatpush1.msra.mxu0 0.0
        %530 = vmatprep.subr.mxu0 0.0
        %531 = vmatpush1.msra.mxu0 0.0
        %532 = vmatprep.subr.mxu0 0.0
        %533 = vmatpush1.msra.mxu0 0.0
        %534 = vmatprep.subr.mxu0 0.0
        %535 = vmatpush1.msra.mxu0 0.0
        %536 = vmatprep.subr.mxu0 0.0
        %537 = vmatpush1.msra.mxu0 0.0
        %538 = vmatprep.subr.mxu0 0.0
        %539 = vmatpush1.msra.mxu0 0.0
        %540 = vmatprep.subr.mxu0 0.0
        %541 = vmatpush1.msra.mxu0 0.0
        %542 = vmatprep.subr.mxu0 0.0
        %543 = vmatpush1.msra.mxu0 0.0
        %544 = vmatprep.subr.mxu0 0.0
        %545 = vmatpush1.msra.mxu0 0.0
        %546 = vmatprep.subr.mxu0 0.0
        %547 = vmatpush1.msra.mxu0 0.0
        %548 = vmatprep.subr.mxu0 0.0
        %549 = vmatpush1.msra.mxu0 0.0
        %550 = vmatprep.subr.mxu0 0.0
        %551 = vmatpush1.msra.mxu0 0.0
        %552 = vmatprep.subr.mxu0 0.0
        %553 = vmatpush1.msra.mxu0 0.0
        %554 = vmatprep.subr.mxu0 0.0
        %555 = vmatpush1.msra.mxu0 0.0
        %556 = vmatprep.mubr.f32.mxu0 0.0
        %557 = vmatmul.mubr.f32.gmra.mrb[0].mxu0 %v490
        %v558 = vpop.f32.mrb[0].mxu0
        %v559 = vadd.f32 0.0, %v558
        %v560 = vpop.f32.mrb[0].mxu0
        %561 = vdwg.mxu0
        %562 = vst.msk [vmem:[#allocation2] sm:$0xff] %vm396, %v559
        %563 = vrot.lane.b32.xlu0 %v390, 120
        %v564 = vpop.permute.xlu0 %563
        %565 = vrot.lane.b32.xlu0 %v390, 88
        %v566 = vpop.permute.xlu0 %565
        %v567 = vsel %vm396, %v564, 0
        %v569 = vsel %vm396, %v566, 0
        %571 = vmatprep.subr.mxu0 0.0
        %572 = vmatpush1.xpose.msra.mxu0 %v569
        %573 = vmatprep.subr.mxu0 0.0
        %574 = vmatpush1.xpose.msra.mxu0 0.0
        %575 = vmatprep.subr.mxu0 0.0
        %576 = vmatpush1.xpose.msra.mxu0 0.0
        %577 = vmatprep.subr.mxu0 0.0
        %578 = vmatpush1.xpose.msra.mxu0 0.0
        %579 = vmatprep.subr.mxu0 0.0
        %580 = vmatpush1.xpose.msra.mxu0 0.0
        %581 = vmatprep.subr.mxu0 0.0
        %582 = vmatpush1.xpose.msra.mxu0 0.0
        %583 = vmatprep.subr.mxu0 0.0
        %584 = vmatpush1.xpose.msra.mxu0 0.0
        %585 = vmatprep.subr.mxu0 0.0
        %586 = vmatpush1.xpose.msra.mxu0 0.0
        %587 = vmatprep.subr.mxu0 0.0
        %588 = vmatpush1.xpose.msra.mxu0 0.0
        %589 = vmatprep.subr.mxu0 0.0
        %590 = vmatpush1.xpose.msra.mxu0 0.0
        %591 = vmatprep.subr.mxu0 0.0
        %592 = vmatpush1.xpose.msra.mxu0 0.0
        %593 = vmatprep.subr.mxu0 0.0
        %594 = vmatpush1.xpose.msra.mxu0 0.0
        %595 = vmatprep.subr.mxu0 0.0
        %596 = vmatpush1.xpose.msra.mxu0 0.0
        %597 = vmatprep.subr.mxu0 0.0
        %598 = vmatpush1.xpose.msra.mxu0 0.0
        %599 = vmatprep.subr.mxu0 0.0
        %600 = vmatpush1.xpose.msra.mxu0 0.0
        %601 = vmatprep.subr.mxu0 0.0
        %602 = vmatpush1.xpose.msra.mxu0 0.0
        %603 = vmatprep.subr.mxu0 0.0
        %604 = vmatpush1.xpose.msra.mxu0 0.0
        %605 = vmatprep.subr.mxu0 0.0
        %606 = vmatpush1.xpose.msra.mxu0 0.0
        %607 = vmatprep.subr.mxu0 0.0
        %608 = vmatpush1.xpose.msra.mxu0 0.0
        %609 = vmatprep.subr.mxu0 0.0
        %610 = vmatpush1.xpose.msra.mxu0 0.0
        %611 = vmatprep.subr.mxu0 0.0
        %612 = vmatpush1.xpose.msra.mxu0 0.0
        %613 = vmatprep.subr.mxu0 0.0
        %614 = vmatpush1.xpose.msra.mxu0 0.0
        %615 = vmatprep.subr.mxu0 0.0
        %616 = vmatpush1.xpose.msra.mxu0 0.0
        %617 = vmatprep.subr.mxu0 0.0
        %618 = vmatpush1.xpose.msra.mxu0 0.0
        %619 = vmatprep.subr.mxu0 0.0
        %620 = vmatpush1.xpose.msra.mxu0 0.0
        %621 = vmatprep.subr.mxu0 0.0
        %622 = vmatpush1.xpose.msra.mxu0 0.0
        %623 = vmatprep.subr.mxu0 0.0
        %624 = vmatpush1.xpose.msra.mxu0 0.0
        %625 = vmatprep.subr.mxu0 0.0
        %626 = vmatpush1.xpose.msra.mxu0 0.0
        %627 = vmatprep.subr.mxu0 0.0
        %628 = vmatpush1.xpose.msra.mxu0 0.0
        %629 = vmatprep.subr.mxu0 0.0
        %630 = vmatpush1.xpose.msra.mxu0 0.0
        %631 = vmatprep.subr.mxu0 0.0
        %632 = vmatpush1.xpose.msra.mxu0 0.0
        %633 = vmatprep.subr.mxu0 0.0
        %634 = vmatpush1.xpose.msra.mxu0 0.0
        %635 = vmatprep.mubr.f32.mxu0 0.0
        %636 = vmatmul.mubr.f32.gmra.mrb[0].mxu0 %v567
        %v637 = vpop.f32.mrb[0].mxu0
        %v638 = vadd.f32 0.0, %v637
        %v639 = vpop.f32.mrb[0].mxu0
        %640 = vdwg.mxu0
        %v641 = vsel %vm396, %v638, -inf
        %642 = vmax.xlane.f32.xlu0 %v641
        %v643 = vpop.xlane.xlu0 %642
        %v644 = vsub.f32 %v638, %v643
        %v645 = vmul.f32 %v644, 1.442695
        %v646 = vpow.pop %v645
        %v647 = vsel %vm396, %v646, 0.0
        %648 = vadd.xlane.f32.xlu0 %v647
        %v649 = vpop.xlane.xlu0 %648
        %v650 = vrcp.pop %v649
        %v651 = vmul.f32 %v649, %v650
        %v652 = vsub.f32 2.0, %v651
        %v653 = vmul.f32 %v650, %v652
        %v654 = vmul.f32 %v646, %v653
        %s655 = scalar_lea.vmem %s306, 8 [#allocation10]
        %656 = vst.msk [vmem:[%s655] sm:$0xff] %vm396, %v654
        %657 = vrot.lane.b32.xlu0 %v390, 56
        %v658 = vpop.permute.xlu0 %657
        %v661 = vsel %vm396, %v654, 0
        %663 = vmatprep.subr.mxu0 0.0
        %664 = vmatpush1.msra.mxu0 %v658
        %665 = vmatprep.subr.mxu0 0.0
        %666 = vmatpush1.msra.mxu0 0.0
        %667 = vmatprep.subr.mxu0 0.0
        %668 = vmatpush1.msra.mxu0 0.0
        %669 = vmatprep.subr.mxu0 0.0
        %670 = vmatpush1.msra.mxu0 0.0
        %671 = vmatprep.subr.mxu0 0.0
        %672 = vmatpush1.msra.mxu0 0.0
        %673 = vmatprep.subr.mxu0 0.0
        %674 = vmatpush1.msra.mxu0 0.0
        %675 = vmatprep.subr.mxu0 0.0
        %676 = vmatpush1.msra.mxu0 0.0
        %677 = vmatprep.subr.mxu0 0.0
        %678 = vmatpush1.msra.mxu0 0.0
        %679 = vmatprep.subr.mxu0 0.0
        %680 = vmatpush1.msra.mxu0 0.0
        %681 = vmatprep.subr.mxu0 0.0
        %682 = vmatpush1.msra.mxu0 0.0
        %683 = vmatprep.subr.mxu0 0.0
        %684 = vmatpush1.msra.mxu0 0.0
        %685 = vmatprep.subr.mxu0 0.0
        %686 = vmatpush1.msra.mxu0 0.0
        %687 = vmatprep.subr.mxu0 0.0
        %688 = vmatpush1.msra.mxu0 0.0
        %689 = vmatprep.subr.mxu0 0.0
        %690 = vmatpush1.msra.mxu0 0.0
        %691 = vmatprep.subr.mxu0 0.0
        %692 = vmatpush1.msra.mxu0 0.0
        %693 = vmatprep.subr.mxu0 0.0
        %694 = vmatpush1.msra.mxu0 0.0
        %695 = vmatprep.subr.mxu0 0.0
        %696 = vmatpush1.msra.mxu0 0.0
        %697 = vmatprep.subr.mxu0 0.0
        %698 = vmatpush1.msra.mxu0 0.0
        %699 = vmatprep.subr.mxu0 0.0
        %700 = vmatpush1.msra.mxu0 0.0
        %701 = vmatprep.subr.mxu0 0.0
        %702 = vmatpush1.msra.mxu0 0.0
        %703 = vmatprep.subr.mxu0 0.0
        %704 = vmatpush1.msra.mxu0 0.0
        %705 = vmatprep.subr.mxu0 0.0
        %706 = vmatpush1.msra.mxu0 0.0
        %707 = vmatprep.subr.mxu0 0.0
        %708 = vmatpush1.msra.mxu0 0.0
        %709 = vmatprep.subr.mxu0 0.0
        %710 = vmatpush1.msra.mxu0 0.0
        %711 = vmatprep.subr.mxu0 0.0
        %712 = vmatpush1.msra.mxu0 0.0
        %713 = vmatprep.subr.mxu0 0.0
        %714 = vmatpush1.msra.mxu0 0.0
        %715 = vmatprep.subr.mxu0 0.0
        %716 = vmatpush1.msra.mxu0 0.0
        %717 = vmatprep.subr.mxu0 0.0
        %718 = vmatpush1.msra.mxu0 0.0
        %719 = vmatprep.subr.mxu0 0.0
        %720 = vmatpush1.msra.mxu0 0.0
        %721 = vmatprep.subr.mxu0 0.0
        %722 = vmatpush1.msra.mxu0 0.0
        %723 = vmatprep.subr.mxu0 0.0
        %724 = vmatpush1.msra.mxu0 0.0
        %725 = vmatprep.subr.mxu0 0.0
        %726 = vmatpush1.msra.mxu0 0.0
        %727 = vmatprep.mubr.f32.mxu0 0.0
        %728 = vmatmul.mubr.f32.gmra.mrb[0].mxu0 %v661
        %v729 = vpop.f32.mrb[0].mxu0
        %v730 = vadd.f32 0.0, %v729
        %v731 = vpop.f32.mrb[0].mxu0
        %732 = vdwg.mxu0
        %734 = vrot.lane.b32.xlu0 %v730, 8
        %v735 = vpop.permute.xlu0 %734
        %vm737 = vcmask 130112
        %738 = vst.msk [vmem:[#allocation2] sm:$0xff] %vm737, %v735
        %739 = vrot.lane.b32.xlu0 %v390, 112
        %v740 = vpop.permute.xlu0 %739
        %741 = vrot.lane.b32.xlu0 %v390, 80
        %v742 = vpop.permute.xlu0 %741
        %v743 = vsel %vm396, %v740, 0
        %v745 = vsel %vm396, %v742, 0
        %747 = vmatprep.subr.mxu0 0.0
        %748 = vmatpush1.xpose.msra.mxu0 %v745
        %749 = vmatprep.subr.mxu0 0.0
        %750 = vmatpush1.xpose.msra.mxu0 0.0
        %751 = vmatprep.subr.mxu0 0.0
        %752 = vmatpush1.xpose.msra.mxu0 0.0
        %753 = vmatprep.subr.mxu0 0.0
        %754 = vmatpush1.xpose.msra.mxu0 0.0
        %755 = vmatprep.subr.mxu0 0.0
        %756 = vmatpush1.xpose.msra.mxu0 0.0
        %757 = vmatprep.subr.mxu0 0.0
        %758 = vmatpush1.xpose.msra.mxu0 0.0
        %759 = vmatprep.subr.mxu0 0.0
        %760 = vmatpush1.xpose.msra.mxu0 0.0
        %761 = vmatprep.subr.mxu0 0.0
        %762 = vmatpush1.xpose.msra.mxu0 0.0
        %763 = vmatprep.subr.mxu0 0.0
        %764 = vmatpush1.xpose.msra.mxu0 0.0
        %765 = vmatprep.subr.mxu0 0.0
        %766 = vmatpush1.xpose.msra.mxu0 0.0
        %767 = vmatprep.subr.mxu0 0.0
        %768 = vmatpush1.xpose.msra.mxu0 0.0
        %769 = vmatprep.subr.mxu0 0.0
        %770 = vmatpush1.xpose.msra.mxu0 0.0
        %771 = vmatprep.subr.mxu0 0.0
        %772 = vmatpush1.xpose.msra.mxu0 0.0
        %773 = vmatprep.subr.mxu0 0.0
        %774 = vmatpush1.xpose.msra.mxu0 0.0
        %775 = vmatprep.subr.mxu0 0.0
        %776 = vmatpush1.xpose.msra.mxu0 0.0
        %777 = vmatprep.subr.mxu0 0.0
        %778 = vmatpush1.xpose.msra.mxu0 0.0
        %779 = vmatprep.subr.mxu0 0.0
        %780 = vmatpush1.xpose.msra.mxu0 0.0
        %781 = vmatprep.subr.mxu0 0.0
        %782 = vmatpush1.xpose.msra.mxu0 0.0
        %783 = vmatprep.subr.mxu0 0.0
        %784 = vmatpush1.xpose.msra.mxu0 0.0
        %785 = vmatprep.subr.mxu0 0.0
        %786 = vmatpush1.xpose.msra.mxu0 0.0
        %787 = vmatprep.subr.mxu0 0.0
        %788 = vmatpush1.xpose.msra.mxu0 0.0
        %789 = vmatprep.subr.mxu0 0.0
        %790 = vmatpush1.xpose.msra.mxu0 0.0
        %791 = vmatprep.subr.mxu0 0.0
        %792 = vmatpush1.xpose.msra.mxu0 0.0
        %793 = vmatprep.subr.mxu0 0.0
        %794 = vmatpush1.xpose.msra.mxu0 0.0
        %795 = vmatprep.subr.mxu0 0.0
        %796 = vmatpush1.xpose.msra.mxu0 0.0
        %797 = vmatprep.subr.mxu0 0.0
        %798 = vmatpush1.xpose.msra.mxu0 0.0
        %799 = vmatprep.subr.mxu0 0.0
        %800 = vmatpush1.xpose.msra.mxu0 0.0
        %801 = vmatprep.subr.mxu0 0.0
        %802 = vmatpush1.xpose.msra.mxu0 0.0
        %803 = vmatprep.subr.mxu0 0.0
        %804 = vmatpush1.xpose.msra.mxu0 0.0
        %805 = vmatprep.subr.mxu0 0.0
        %806 = vmatpush1.xpose.msra.mxu0 0.0
        %807 = vmatprep.subr.mxu0 0.0
        %808 = vmatpush1.xpose.msra.mxu0 0.0
        %809 = vmatprep.subr.mxu0 0.0
        %810 = vmatpush1.xpose.msra.mxu0 0.0
        %811 = vmatprep.mubr.f32.mxu0 0.0
        %812 = vmatmul.mubr.f32.gmra.mrb[0].mxu0 %v743
        %v813 = vpop.f32.mrb[0].mxu0
        %v814 = vadd.f32 0.0, %v813
        %v815 = vpop.f32.mrb[0].mxu0
        %816 = vdwg.mxu0
        %v817 = vsel %vm396, %v814, -inf
        %818 = vmax.xlane.f32.xlu0 %v817
        %v819 = vpop.xlane.xlu0 %818
        %v820 = vsub.f32 %v814, %v819
        %v821 = vmul.f32 %v820, 1.442695
        %v822 = vpow.pop %v821
        %v823 = vsel %vm396, %v822, 0.0
        %824 = vadd.xlane.f32.xlu0 %v823
        %v825 = vpop.xlane.xlu0 %824
        %v826 = vrcp.pop %v825
        %v827 = vmul.f32 %v825, %v826
        %v828 = vsub.f32 2.0, %v827
        %v829 = vmul.f32 %v826, %v828
        %v830 = vmul.f32 %v822, %v829
        %s831 = scalar_lea.vmem %s306, 16 [#allocation10]
        %832 = vst.msk [vmem:[%s831] sm:$0xff] %vm396, %v830
        %833 = vrot.lane.b32.xlu0 %v390, 48
        %v834 = vpop.permute.xlu0 %833
        %v837 = vsel %vm396, %v830, 0
        %839 = vmatprep.subr.mxu0 0.0
        %840 = vmatpush1.msra.mxu0 %v834
        %841 = vmatprep.subr.mxu0 0.0
        %842 = vmatpush1.msra.mxu0 0.0
        %843 = vmatprep.subr.mxu0 0.0
        %844 = vmatpush1.msra.mxu0 0.0
        %845 = vmatprep.subr.mxu0 0.0
        %846 = vmatpush1.msra.mxu0 0.0
        %847 = vmatprep.subr.mxu0 0.0
        %848 = vmatpush1.msra.mxu0 0.0
        %849 = vmatprep.subr.mxu0 0.0
        %850 = vmatpush1.msra.mxu0 0.0
        %851 = vmatprep.subr.mxu0 0.0
        %852 = vmatpush1.msra.mxu0 0.0
        %853 = vmatprep.subr.mxu0 0.0
        %854 = vmatpush1.msra.mxu0 0.0
        %855 = vmatprep.subr.mxu0 0.0
        %856 = vmatpush1.msra.mxu0 0.0
        %857 = vmatprep.subr.mxu0 0.0
        %858 = vmatpush1.msra.mxu0 0.0
        %859 = vmatprep.subr.mxu0 0.0
        %860 = vmatpush1.msra.mxu0 0.0
        %861 = vmatprep.subr.mxu0 0.0
        %862 = vmatpush1.msra.mxu0 0.0
        %863 = vmatprep.subr.mxu0 0.0
        %864 = vmatpush1.msra.mxu0 0.0
        %865 = vmatprep.subr.mxu0 0.0
        %866 = vmatpush1.msra.mxu0 0.0
        %867 = vmatprep.subr.mxu0 0.0
        %868 = vmatpush1.msra.mxu0 0.0
        %869 = vmatprep.subr.mxu0 0.0
        %870 = vmatpush1.msra.mxu0 0.0
        %871 = vmatprep.subr.mxu0 0.0
        %872 = vmatpush1.msra.mxu0 0.0
        %873 = vmatprep.subr.mxu0 0.0
        %874 = vmatpush1.msra.mxu0 0.0
        %875 = vmatprep.subr.mxu0 0.0
        %876 = vmatpush1.msra.mxu0 0.0
        %877 = vmatprep.subr.mxu0 0.0
        %878 = vmatpush1.msra.mxu0 0.0
        %879 = vmatprep.subr.mxu0 0.0
        %880 = vmatpush1.msra.mxu0 0.0
        %881 = vmatprep.subr.mxu0 0.0
        %882 = vmatpush1.msra.mxu0 0.0
        %883 = vmatprep.subr.mxu0 0.0
        %884 = vmatpush1.msra.mxu0 0.0
        %885 = vmatprep.subr.mxu0 0.0
        %886 = vmatpush1.msra.mxu0 0.0
        %887 = vmatprep.subr.mxu0 0.0
        %888 = vmatpush1.msra.mxu0 0.0
        %889 = vmatprep.subr.mxu0 0.0
        %890 = vmatpush1.msra.mxu0 0.0
        %891 = vmatprep.subr.mxu0 0.0
        %892 = vmatpush1.msra.mxu0 0.0
        %893 = vmatprep.subr.mxu0 0.0
        %894 = vmatpush1.msra.mxu0 0.0
        %895 = vmatprep.subr.mxu0 0.0
        %896 = vmatpush1.msra.mxu0 0.0
        %897 = vmatprep.subr.mxu0 0.0
        %898 = vmatpush1.msra.mxu0 0.0
        %899 = vmatprep.subr.mxu0 0.0
        %900 = vmatpush1.msra.mxu0 0.0
        %901 = vmatprep.subr.mxu0 0.0
        %902 = vmatpush1.msra.mxu0 0.0
        %903 = vmatprep.mubr.f32.mxu0 0.0
        %904 = vmatmul.mubr.f32.gmra.mrb[0].mxu0 %v837
        %v905 = vpop.f32.mrb[0].mxu0
        %v906 = vadd.f32 0.0, %v905
        %v907 = vpop.f32.mrb[0].mxu0
        %908 = vdwg.mxu0
        %910 = vrot.lane.b32.xlu0 %v906, 16
        %v911 = vpop.permute.xlu0 %910
        %vm913 = vcmask 195712
        %914 = vst.msk [vmem:[#allocation2] sm:$0xff] %vm913, %v911
        %915 = vrot.lane.b32.xlu0 %v390, 104
        %v916 = vpop.permute.xlu0 %915
        %917 = vrot.lane.b32.xlu0 %v390, 72
        %v918 = vpop.permute.xlu0 %917
        %v919 = vsel %vm396, %v916, 0
        %v921 = vsel %vm396, %v918, 0
        %923 = vmatprep.subr.mxu0 0.0
        %924 = vmatpush1.xpose.msra.mxu0 %v921
        %925 = vmatprep.subr.mxu0 0.0
        %926 = vmatpush1.xpose.msra.mxu0 0.0
        %927 = vmatprep.subr.mxu0 0.0
        %928 = vmatpush1.xpose.msra.mxu0 0.0
        %929 = vmatprep.subr.mxu0 0.0
        %930 = vmatpush1.xpose.msra.mxu0 0.0
        %931 = vmatprep.subr.mxu0 0.0
        %932 = vmatpush1.xpose.msra.mxu0 0.0
        %933 = vmatprep.subr.mxu0 0.0
        %934 = vmatpush1.xpose.msra.mxu0 0.0
        %935 = vmatprep.subr.mxu0 0.0
        %936 = vmatpush1.xpose.msra.mxu0 0.0
        %937 = vmatprep.subr.mxu0 0.0
        %938 = vmatpush1.xpose.msra.mxu0 0.0
        %939 = vmatprep.subr.mxu0 0.0
        %940 = vmatpush1.xpose.msra.mxu0 0.0
        %941 = vmatprep.subr.mxu0 0.0
        %942 = vmatpush1.xpose.msra.mxu0 0.0
        %943 = vmatprep.subr.mxu0 0.0
        %944 = vmatpush1.xpose.msra.mxu0 0.0
        %945 = vmatprep.subr.mxu0 0.0
        %946 = vmatpush1.xpose.msra.mxu0 0.0
        %947 = vmatprep.subr.mxu0 0.0
        %948 = vmatpush1.xpose.msra.mxu0 0.0
        %949 = vmatprep.subr.mxu0 0.0
        %950 = vmatpush1.xpose.msra.mxu0 0.0
        %951 = vmatprep.subr.mxu0 0.0
        %952 = vmatpush1.xpose.msra.mxu0 0.0
        %953 = vmatprep.subr.mxu0 0.0
        %954 = vmatpush1.xpose.msra.mxu0 0.0
        %955 = vmatprep.subr.mxu0 0.0
        %956 = vmatpush1.xpose.msra.mxu0 0.0
        %957 = vmatprep.subr.mxu0 0.0
        %958 = vmatpush1.xpose.msra.mxu0 0.0
        %959 = vmatprep.subr.mxu0 0.0
        %960 = vmatpush1.xpose.msra.mxu0 0.0
        %961 = vmatprep.subr.mxu0 0.0
        %962 = vmatpush1.xpose.msra.mxu0 0.0
        %963 = vmatprep.subr.mxu0 0.0
        %964 = vmatpush1.xpose.msra.mxu0 0.0
        %965 = vmatprep.subr.mxu0 0.0
        %966 = vmatpush1.xpose.msra.mxu0 0.0
        %967 = vmatprep.subr.mxu0 0.0
        %968 = vmatpush1.xpose.msra.mxu0 0.0
        %969 = vmatprep.subr.mxu0 0.0
        %970 = vmatpush1.xpose.msra.mxu0 0.0
        %971 = vmatprep.subr.mxu0 0.0
        %972 = vmatpush1.xpose.msra.mxu0 0.0
        %973 = vmatprep.subr.mxu0 0.0
        %974 = vmatpush1.xpose.msra.mxu0 0.0
        %975 = vmatprep.subr.mxu0 0.0
        %976 = vmatpush1.xpose.msra.mxu0 0.0
        %977 = vmatprep.subr.mxu0 0.0
        %978 = vmatpush1.xpose.msra.mxu0 0.0
        %979 = vmatprep.subr.mxu0 0.0
        %980 = vmatpush1.xpose.msra.mxu0 0.0
        %981 = vmatprep.subr.mxu0 0.0
        %982 = vmatpush1.xpose.msra.mxu0 0.0
        %983 = vmatprep.subr.mxu0 0.0
        %984 = vmatpush1.xpose.msra.mxu0 0.0
        %985 = vmatprep.subr.mxu0 0.0
        %986 = vmatpush1.xpose.msra.mxu0 0.0
        %987 = vmatprep.mubr.f32.mxu0 0.0
        %988 = vmatmul.mubr.f32.gmra.mrb[0].mxu0 %v919
        %v989 = vpop.f32.mrb[0].mxu0
        %v990 = vadd.f32 0.0, %v989
        %v991 = vpop.f32.mrb[0].mxu0
        %992 = vdwg.mxu0
        %v993 = vsel %vm396, %v990, -inf
        %994 = vmax.xlane.f32.xlu0 %v993
        %v995 = vpop.xlane.xlu0 %994
        %v996 = vsub.f32 %v990, %v995
        %v997 = vmul.f32 %v996, 1.442695
        %v998 = vpow.pop %v997
        %v999 = vsel %vm396, %v998, 0.0
        %1000 = vadd.xlane.f32.xlu0 %v999
        %v1001 = vpop.xlane.xlu0 %1000
        %v1002 = vrcp.pop %v1001
        %v1003 = vmul.f32 %v1001, %v1002
        %v1004 = vsub.f32 2.0, %v1003
        %v1005 = vmul.f32 %v1002, %v1004
        %v1006 = vmul.f32 %v998, %v1005
        %s1007 = scalar_lea.vmem %s306, 24 [#allocation10]
        %1008 = vst.msk [vmem:[%s1007] sm:$0xff] %vm396, %v1006
        %1009 = vrot.lane.b32.xlu0 %v390, 40
        %v1010 = vpop.permute.xlu0 %1009
        %v1013 = vsel %vm396, %v1006, 0
        %1015 = vmatprep.subr.mxu0 0.0
        %1016 = vmatpush1.msra.mxu0 %v1010
        %1017 = vmatprep.subr.mxu0 0.0
        %1018 = vmatpush1.msra.mxu0 0.0
        %1019 = vmatprep.subr.mxu0 0.0
        %1020 = vmatpush1.msra.mxu0 0.0
        %1021 = vmatprep.subr.mxu0 0.0
        %1022 = vmatpush1.msra.mxu0 0.0
        %1023 = vmatprep.subr.mxu0 0.0
        %1024 = vmatpush1.msra.mxu0 0.0
        %1025 = vmatprep.subr.mxu0 0.0
        %1026 = vmatpush1.msra.mxu0 0.0
        %1027 = vmatprep.subr.mxu0 0.0
        %1028 = vmatpush1.msra.mxu0 0.0
        %1029 = vmatprep.subr.mxu0 0.0
        %1030 = vmatpush1.msra.mxu0 0.0
        %1031 = vmatprep.subr.mxu0 0.0
        %1032 = vmatpush1.msra.mxu0 0.0
        %1033 = vmatprep.subr.mxu0 0.0
        %1034 = vmatpush1.msra.mxu0 0.0
        %1035 = vmatprep.subr.mxu0 0.0
        %1036 = vmatpush1.msra.mxu0 0.0
        %1037 = vmatprep.subr.mxu0 0.0
        %1038 = vmatpush1.msra.mxu0 0.0
        %1039 = vmatprep.subr.mxu0 0.0
        %1040 = vmatpush1.msra.mxu0 0.0
        %1041 = vmatprep.subr.mxu0 0.0
        %1042 = vmatpush1.msra.mxu0 0.0
        %1043 = vmatprep.subr.mxu0 0.0
        %1044 = vmatpush1.msra.mxu0 0.0
        %1045 = vmatprep.subr.mxu0 0.0
        %1046 = vmatpush1.msra.mxu0 0.0
        %1047 = vmatprep.subr.mxu0 0.0
        %1048 = vmatpush1.msra.mxu0 0.0
        %1049 = vmatprep.subr.mxu0 0.0
        %1050 = vmatpush1.msra.mxu0 0.0
        %1051 = vmatprep.subr.mxu0 0.0
        %1052 = vmatpush1.msra.mxu0 0.0
        %1053 = vmatprep.subr.mxu0 0.0
        %1054 = vmatpush1.msra.mxu0 0.0
        %1055 = vmatprep.subr.mxu0 0.0
        %1056 = vmatpush1.msra.mxu0 0.0
        %1057 = vmatprep.subr.mxu0 0.0
        %1058 = vmatpush1.msra.mxu0 0.0
        %1059 = vmatprep.subr.mxu0 0.0
        %1060 = vmatpush1.msra.mxu0 0.0
        %1061 = vmatprep.subr.mxu0 0.0
        %1062 = vmatpush1.msra.mxu0 0.0
        %1063 = vmatprep.subr.mxu0 0.0
        %1064 = vmatpush1.msra.mxu0 0.0
        %1065 = vmatprep.subr.mxu0 0.0
        %1066 = vmatpush1.msra.mxu0 0.0
        %1067 = vmatprep.subr.mxu0 0.0
        %1068 = vmatpush1.msra.mxu0 0.0
        %1069 = vmatprep.subr.mxu0 0.0
        %1070 = vmatpush1.msra.mxu0 0.0
        %1071 = vmatprep.subr.mxu0 0.0
        %1072 = vmatpush1.msra.mxu0 0.0
        %1073 = vmatprep.subr.mxu0 0.0
        %1074 = vmatpush1.msra.mxu0 0.0
        %1075 = vmatprep.subr.mxu0 0.0
        %1076 = vmatpush1.msra.mxu0 0.0
        %1077 = vmatprep.subr.mxu0 0.0
        %1078 = vmatpush1.msra.mxu0 0.0
        %1079 = vmatprep.mubr.f32.mxu0 0.0
        %1080 = vmatmul.mubr.f32.gmra.mrb[0].mxu0 %v1013
        %v1081 = vpop.f32.mrb[0].mxu0
        %v1082 = vadd.f32 0.0, %v1081
        %v1083 = vpop.f32.mrb[0].mxu0
        %1084 = vdwg.mxu0
        %1086 = vrot.lane.b32.xlu0 %v1082, 24
        %v1087 = vpop.permute.xlu0 %1086
        %vm1089 = vcmask 261312
        %1090 = vst.msk [vmem:[#allocation2] sm:$0xff] %vm1089, %v1087
        %v1091 = vld [vmem:[#allocation2] sm:$0xff]
        %v1092 = vld [vmem:[#allocation8] sm:$0xff]
        %v1093 = vld [vmem:[#allocation8 + $0x8] sm:$0xff]
        %v1094 = vld [vmem:[#allocation8 + $0x10] sm:$0xff]
        %v1095 = vld [vmem:[#allocation8 + $0x18] sm:$0xff]
        %v1096 = vld [vmem:[%s4] sm:$0x1]
        %v1098 = vlaneseq
        %v1099 = vshrl.u32 %v1098, 7
        %v1100 = vsub.s32 0, %v1099
        %v1101 = vrot.slane %v1096, %v1100
        %v1104 = vsel %vm319, %v1091, 0
        %1106 = vmatprep.subr.mxu0 0.0
        %1107 = vmatpush1.msra.mxu0 %v1092
        %1108 = vmatprep.subr.mxu0 0.0
        %1109 = vmatpush1.msra.mxu0 %v1093
        %1110 = vmatprep.subr.mxu0 0.0
        %1111 = vmatpush1.msra.mxu0 %v1094
        %1112 = vmatprep.subr.mxu0 0.0
        %1113 = vmatpush1.msra.mxu0 %v1095
        %1114 = vmatprep.subr.mxu0 0.0
        %1115 = vmatpush1.msra.mxu0 0.0
        %1116 = vmatprep.subr.mxu0 0.0
        %1117 = vmatpush1.msra.mxu0 0.0
        %1118 = vmatprep.subr.mxu0 0.0
        %1119 = vmatpush1.msra.mxu0 0.0
        %1120 = vmatprep.subr.mxu0 0.0
        %1121 = vmatpush1.msra.mxu0 0.0
        %1122 = vmatprep.subr.mxu0 0.0
        %1123 = vmatpush1.msra.mxu0 0.0
        %1124 = vmatprep.subr.mxu0 0.0
        %1125 = vmatpush1.msra.mxu0 0.0
        %1126 = vmatprep.subr.mxu0 0.0
        %1127 = vmatpush1.msra.mxu0 0.0
        %1128 = vmatprep.subr.mxu0 0.0
        %1129 = vmatpush1.msra.mxu0 0.0
        %1130 = vmatprep.subr.mxu0 0.0
        %1131 = vmatpush1.msra.mxu0 0.0
        %1132 = vmatprep.subr.mxu0 0.0
        %1133 = vmatpush1.msra.mxu0 0.0
        %1134 = vmatprep.subr.mxu0 0.0
        %1135 = vmatpush1.msra.mxu0 0.0
        %1136 = vmatprep.subr.mxu0 0.0
        %1137 = vmatpush1.msra.mxu0 0.0
        %1138 = vmatprep.subr.mxu0 0.0
        %1139 = vmatpush1.msra.mxu0 0.0
        %1140 = vmatprep.subr.mxu0 0.0
        %1141 = vmatpush1.msra.mxu0 0.0
        %1142 = vmatprep.subr.mxu0 0.0
        %1143 = vmatpush1.msra.mxu0 0.0
        %1144 = vmatprep.subr.mxu0 0.0
        %1145 = vmatpush1.msra.mxu0 0.0
        %1146 = vmatprep.subr.mxu0 0.0
        %1147 = vmatpush1.msra.mxu0 0.0
        %1148 = vmatprep.subr.mxu0 0.0
        %1149 = vmatpush1.msra.mxu0 0.0
        %1150 = vmatprep.subr.mxu0 0.0
        %1151 = vmatpush1.msra.mxu0 0.0
        %1152 = vmatprep.subr.mxu0 0.0
        %1153 = vmatpush1.msra.mxu0 0.0
        %1154 = vmatprep.subr.mxu0 0.0
        %1155 = vmatpush1.msra.mxu0 0.0
        %1156 = vmatprep.subr.mxu0 0.0
        %1157 = vmatpush1.msra.mxu0 0.0
        %1158 = vmatprep.subr.mxu0 0.0
        %1159 = vmatpush1.msra.mxu0 0.0
        %1160 = vmatprep.subr.mxu0 0.0
        %1161 = vmatpush1.msra.mxu0 0.0
        %1162 = vmatprep.subr.mxu0 0.0
        %1163 = vmatpush1.msra.mxu0 0.0
        %1164 = vmatprep.subr.mxu0 0.0
        %1165 = vmatpush1.msra.mxu0 0.0
        %1166 = vmatprep.subr.mxu0 0.0
        %1167 = vmatpush1.msra.mxu0 0.0
        %1168 = vmatprep.subr.mxu0 0.0
        %1169 = vmatpush1.msra.mxu0 0.0
        %1170 = vmatprep.mubr.f32.mxu0 0.0
        %1171 = vmatmul.mubr.f32.gmra.mrb[0].mxu0 %v1104
        %v1172 = vpop.f32.mrb[0].mxu0
        %v1173 = vadd.f32 %v1101, %v1172
        %v1174 = vpop.f32.mrb[0].mxu0
        %1175 = vdwg.mxu0
        %1176 = vst.msk [vmem:[%s299] sm:$0xff] %vm319, %v1173
        %s1177 = sand.u32 %s146, 1
        %s1178 = scalar_lea.sflag [#allocation5], %s1177
        %s1179 = sand.u32 %s146, 1
        %s1180 = smul.addr %s1179, 8
        %s1181 = scalar_lea.vmem [#allocation9], %s1180
        %s1182 = sand.u32 %s172, 1
        %s1183 = scalar_lea.sflag [#allocation11], %s1182
        %s1184 = sand.u32 %s172, 1
        %s1185 = smul.addr %s1184, 32
        %s1186 = scalar_lea.vmem [#allocation10], %s1185
        // Predicated region
        $region53: #{tpu_custom_call.1} parent=39 // pred_check
          %p1187 = pneg %p156
        $region54: #{tpu_custom_call.1} parent=39 // pred_check_branch
          %1189 = sbr.rel (%p1187) target = $region56
        $region55: #{tpu_custom_call.1} parent=39 // pred_region
          %s1191 = ssub.s32 128, 128
          %1192 = vsyncadd %s1178, %s1191
          %s1193 = smul.addr %s28, 128
          %s1194 = scalar_lea.hbm %s5, %s1193
          %s1196 = sshll.u32 %s1181, 4
          %s1197 = int_to_ptr.vmem [resolvable:$true] %s1196
          %1199 = dma.vmem_to_hbm [thread:$0]  %s1197, 128, %s1194, %s1178
        $region56: #{tpu_custom_call.1} parent=39 // pred_fallthru
          _
        // Predicated region
        $region57: #{tpu_custom_call.1} parent=39 // pred_check
          %p1200 = pneg %p182
        $region58: #{tpu_custom_call.1} parent=39 // pred_check_branch
          %1202 = sbr.rel (%p1200) target = $region60
        $region59: #{tpu_custom_call.1} parent=39 // pred_region
          %s1204 = ssub.s32 512, 512
          %1205 = vsyncadd %s1183, %s1204
          %s1206 = smul.addr %s28, 4
          %s1207 = smul.addr %s1206, 128
          %s1208 = scalar_lea.hbm %s6, %s1207
          %s1209 = sshll.u32 %s1186, 4
          %s1210 = int_to_ptr.vmem [resolvable:$true] %s1209
          %1215 = dma.vmem_to_hbm [thread:$0]  %s1210, 512, %s1208, %s1183, 128, 128, 8
        $region60: #{tpu_custom_call.1} parent=39 // pred_fallthru
          _
      $region40: #{tpu_custom_call.1} parent=5 // pred_fallthru
        _
      %p1216 = scmp.le.s32.totalorder 2, %s23
      // Predicated region
      $region61: #{tpu_custom_call.1} parent=5 // pred_check
        %p1217 = pneg %p1216
      $region62: #{tpu_custom_call.1} parent=5 // pred_check_branch
        %1219 = sbr.rel (%p1217) target = $region64
      $region63: #{tpu_custom_call.1} parent=5 // pred_region
        %s1220 = ssub.s32 %s23, 2
        // Predicated region
        $region65: #{tpu_custom_call.1} parent=63 // pred_check
          %p1221 = pneg %p162
        $region66: #{tpu_custom_call.1} parent=63 // pred_check_branch
          %1223 = sbr.rel (%p1221) target = $region68
        $region67: #{tpu_custom_call.1} parent=63 // pred_region
          %s1224 = sand.u32 %s147, 1
          %s1225 = scalar_lea.sflag [#allocation5], %s1224
          %s1226 = sand.u32 %s147, 1
          %s1227 = smul.addr %s1226, 8
          %s1228 = scalar_lea.vmem [#allocation9], %s1227
          %1229 = dma.done %s1225, 128
        $region68: #{tpu_custom_call.1} parent=63 // pred_fallthru
          _
        // Predicated region
        $region69: #{tpu_custom_call.1} parent=63 // pred_check
          %p1230 = pneg %p188
        $region70: #{tpu_custom_call.1} parent=63 // pred_check_branch
          %1232 = sbr.rel (%p1230) target = $region72
        $region71: #{tpu_custom_call.1} parent=63 // pred_region
          %s1233 = sand.u32 %s173, 1
          %s1234 = scalar_lea.sflag [#allocation11], %s1233
          %s1235 = sand.u32 %s173, 1
          %s1236 = smul.addr %s1235, 32
          %s1237 = scalar_lea.vmem [#allocation10], %s1236
          %1238 = dma.done %s1234, 512
        $region72: #{tpu_custom_call.1} parent=63 // pred_fallthru
          _
      $region64: #{tpu_custom_call.1} parent=5 // pred_fallthru
        _
    $region6: #{tpu_custom_call.1} parent=1 // loop_footer
      %s27 = sadd.s32 1, %s23
    $region7: #{tpu_custom_call.1} parent=1 // loop_footer_branch
      %22 = sbr.rel target = $region3
    $region8: #{tpu_custom_call.1} parent=1 // loop_exit
      _
    %1239 = vsyncpa [#allocation4], 1
    %s1240 = scalar_lea.sflag [#allocation4], 1
    %1241 = vsyncpa %s1240, 1
    %1242 = vsyncpa [#allocation7], 1
    %1243 = vsyncpa [#allocation5], 1
    %s1244 = scalar_lea.sflag [#allocation5], 1
    %1245 = vsyncpa %s1244, 1
    %1246 = vsyncpa [#allocation11], 1
    %s1247 = scalar_lea.sflag [#allocation11], 1
    %1248 = vsyncpa %s1247, 1

</llo_original>
